<compile_context>
chip_gen: v7x
topology: tpu7x:2x2x1
jax: 0.10.0
libtpu: 0.0.40
codegen_flags: <defaults>
</compile_context>

<pallas_src>
import functools
import math

import jax
import jax.numpy as jnp
from jax import lax
from jax.experimental import pallas as pl
from jax.experimental.pallas import tpu as pltpu


# ----------------------------- config ---------------------------------------


class ThreeTokenGPTConfig:
    def __init__(self, r_vocab_size, theta_vocab_size, phi_vocab_size,
                 d_model=256, n_heads=4, n_layers=4, d_ff=1024,
                 dropout=0.1, max_seq_len=512):
        self.r_vocab_size = r_vocab_size
        self.theta_vocab_size = theta_vocab_size
        self.phi_vocab_size = phi_vocab_size
        self.d_model = d_model
        self.n_heads = n_heads
        self.n_layers = n_layers
        self.d_ff = d_ff
        self.dropout = dropout
        self.max_seq_len = max_seq_len


def _round_up(x, m):
    return ((x + m - 1) // m) * m


def _tpu_generation_defaults():
    """Generation-dependent tiling / VMEM settings."""
    try:
        kind = jax.devices()[0].device_kind.lower()
    except Exception:
        kind = ""
    if "v7" in kind:
        # 64 MiB VMEM per TensorCore, 2 TCs/chip: smaller tiles, force >= 2 batch
        # tiles so the "parallel" grid axis spans both cores.
        return {'row_cap': 512, 'min_tiles': 2, 'vmem_ceiling': 48 << 20}
    # v5e / v6e: 128 MiB VMEM, one TensorCore: bigger row tiles amortize the
    # per-grid-step overhead and the weight-prefetch.
    return {'row_cap': 2048, 'min_tiles': 1, 'vmem_ceiling': 100 << 20}


def _pick_batch_tile(B, T, row_cap, min_tiles):
    """Sequences per row-tile.  Tiles must cover whole sequences (attention mixes
    rows within a sequence).  Respect the per-generation row cap and, on
    multi-TensorCore chips, leave at least `min_tiles` tiles."""
    tb_max = B if min_tiles <= 1 else max(1, B // min_tiles)
    for tb in range(tb_max, 0, -1):
        if B % tb:
            continue
        rows = tb * T
        if rows > row_cap and tb > 1:
            continue
        if rows % 8 == 0 or tb == B:
            return tb
    return B if (T % 8) else 1


# ----------------------------- in-kernel math --------------------------------


def _erf(x):
    # Abramowitz & Stegun 7.1.26 rational approximation, |err| < ~1.5e-7.
    # Exact divide here (approx reciprocal would degrade accuracy to ~1e-4).
    a1, a2, a3, a4, a5 = 0.254829592, -0.284496736, 1.421413741, -1.453152027, 1.061405429
    p = 0.3275911
    ax = jnp.abs(x)
    t = 1.0 / (1.0 + p * ax)
    poly = ((((a5 * t + a4) * t + a3) * t + a2) * t + a1) * t
    y = 1.0 - poly * jnp.exp(-ax * ax)
    return jnp.where(x >= 0, y, -y)


def _layernorm(z, g, b):
    mu = jnp.mean(z, axis=-1, keepdims=True)
    var = jnp.mean((z - mu) * (z - mu), axis=-1, keepdims=True)
    return (z - mu) * lax.rsqrt(var + 1e-5) * g + b


# ----------------------------- the fused kernel ------------------------------


def _fused_forward_kernel(r_ref, t_ref, p_ref, table_ref, pos_ref,
                          wqkv_ref, bqkv_ref, wo_ref, bo_ref,
                          g1_ref, b1_ref, cross_ref, g2_ref, b2_ref,
                          w1_ref, f1_ref, w2_ref, f2_ref, g3_ref, b3_ref,
                          hw_ref, hb_ref,
                          out_ref,
                          *, tb, seq, n_heads, n_layers, off_t, off_p):
    """Embedding + L post-norm decoder layers (causal MHSA, constant zero-memory
    cross-attn, erf-GELU FFN) + fused output heads, all on one whole-sequence
    batch tile.  Stacked weights are full VMEM-resident blocks indexed per layer."""
    rows, h_pad = out_ref.shape
    v_pad, d = table_ref.shape
    dh = d // n_heads

    # ---- fused (r + theta + phi) embedding lookup + positional add ----
    iota = lax.broadcasted_iota(jnp.int32, (rows, v_pad), 1)
    onehot = ((r_ref[...] == iota)
              | ((t_ref[...] + off_t) == iota)
              | ((p_ref[...] + off_p) == iota))
    onehot = onehot.astype(jnp.float32).astype(jnp.bfloat16)   # exact 0/1 values
    x = jnp.dot(onehot, table_ref[...], preferred_element_type=jnp.float32)
    x = (x.reshape(tb, seq, d) + pos_ref[...][None, :, :]).reshape(rows, d)
    # nn.Dropout after the embedding sum is identity in inference mode.

    # causal mask, computed once and reused by every layer / head
    qpos = lax.broadcasted_iota(jnp.int32, (seq, seq), 0)
    kpos = lax.broadcasted_iota(jnp.int32, (seq, seq), 1)
    allowed = (qpos >= kpos)[None, :, :]                       # (1, T, T) bool

    def layer_body(l, x):
        xb = x.astype(jnp.bfloat16)

        # Fused Q/K/V projection: one (rows, d) @ (d, 3d) MXU matmul.
        # The 1/sqrt(dh) attention scale is already folded into wq / bq.
        qkv = (jnp.dot(xb, wqkv_ref[l], preferred_element_type=jnp.float32)
               + bqkv_ref[l]).astype(jnp.bfloat16)

        outs = []
        for h in range(n_heads):
            qh = qkv[:, h * dh:(h + 1) * dh].reshape(tb, seq, dh)
            kh = qkv[:, d + h * dh:d + (h + 1) * dh].reshape(tb, seq, dh)
            vh = qkv[:, 2 * d + h * dh:2 * d + (h + 1) * dh].reshape(tb, seq, dh)
            s = jnp.einsum('bqd,bkd->bqk', qh, kh,
                           preferred_element_type=jnp.float32)
            s = jnp.where(allowed, s, -1e30)
            m = jnp.max(s, axis=-1, keepdims=True)
            e = jnp.exp(s - m)
            pr = e * pl.reciprocal(jnp.sum(e, axis=-1, keepdims=True), approx=True)
            oh = jnp.einsum('bqk,bkd->bqd', pr.astype(jnp.bfloat16), vh,
                            preferred_element_type=jnp.float32)
            outs.append(oh.reshape(rows, dh))
        # concat heads in registers (lane-dense); no VMEM scratch round trip
        attn = jnp.concatenate(outs, axis=-1).astype(jnp.bfloat16)
        attn = jnp.dot(attn, wo_ref[l], preferred_element_type=jnp.float32) + bo_ref[l]

        h1 = _layernorm(x + attn, g1_ref[l], b1_ref[l])                # norm1
        h2 = _layernorm(h1 + cross_ref[l], g2_ref[l], b2_ref[l])       # norm2 (zero-mem cross-attn const)

        # FFN; GELU constants folded into w1/b1 (x 1/sqrt2) and w2 (x 1/sqrt2):
        #   gelu(u) @ w2 == (hmid * (1 + erf(hmid))) @ w2_scaled,  hmid = u/sqrt(2)
        hmid = jnp.dot(h2.astype(jnp.bfloat16), w1_ref[l],
                       preferred_element_type=jnp.float32) + f1_ref[l]
        g = hmid * (1.0 + _erf(hmid))
        ff = jnp.dot(g.astype(jnp.bfloat16), w2_ref[l],
                     preferred_element_type=jnp.float32) + f2_ref[l]
        return _layernorm(h2 + ff, g3_ref[l], b3_ref[l])               # norm3

    x = lax.fori_loop(0, n_layers, layer_body, x)

    # ---- fused r/theta/phi output heads: one lane-dense (pad-128) matmul ----
    out_ref[...] = (jnp.dot(x.astype(jnp.bfloat16), hw_ref[...],
                            preferred_element_type=jnp.float32) + hb_ref[...])


# ----------------------------- weight prep -----------------------------------


def prepare_weights(params, cfg):
    """Stack per-layer weights into (L, ...) arrays, fuse QKV / embeddings / heads,
    cast matmul weights to bf16, fold the attention scale and GELU constants, and
    fold the zero-memory cross-attention into a per-layer constant."""
    Vr, Vt, Vp = cfg.r_vocab_size, cfg.theta_vocab_size, cfg.phi_vocab_size
    D, H = cfg.d_model, cfg.n_heads
    dh = D // H
    scale = 1.0 / math.sqrt(dh)          # PyTorch MHA q scaling -> folded into wq/bq
    isq2 = 1.0 / math.sqrt(2.0)          # GELU constants -> folded into w1/b1/w2
    layers = params['layers']
    bf16 = jnp.bfloat16
    st = lambda name: jnp.stack([lp[name] for lp in layers])

    # fused, lane-padded embedding table (bf16: one-hot selection stays exact,
    # only table values round — inference-acceptable).
    v_tot = Vr + Vt + Vp
    v_pad = _round_up(v_tot, 128)
    table = jnp.concatenate(
        [params['r_emb'], params['theta_emb'], params['phi_emb']], axis=0)
    table = jnp.pad(table, ((0, v_pad - v_tot), (0, 0))).astype(bf16)

    # fused, lane-padded output heads
    head_w = jnp.concatenate(
        [params['r_head_w'], params['theta_head_w'], params['phi_head_w']], axis=1)
    head_b = jnp.concatenate(
        [params['r_head_b'], params['theta_head_b'], params['phi_head_b']], axis=1)
    head_w = jnp.pad(head_w, ((0, 0), (0, v_pad - v_tot))).astype(bf16)
    head_b = jnp.pad(head_b, ((0, 0), (0, v_pad - v_tot))).astype(jnp.float32)

    # fused QKV projection, attention scale folded into the Q block
    wqkv = jnp.stack([jnp.concatenate([lp['wq'] * scale, lp['wk'], lp['wv']], axis=1)
                      for lp in layers]).astype(bf16)
    bqkv = jnp.stack([jnp.concatenate([lp['bq'] * scale, lp['bk'], lp['bv']], axis=1)
                      for lp in layers]).astype(jnp.float32)

    # cross-attention against zero memory (length 1): V = b_v, softmax over one
    # key == 1  =>  output = out_proj(b_v) + b_o  (constant per layer, exact).
    cross = jnp.stack([
        lp['cross_bv'][None, :] @ lp['cross_wo'] + lp['cross_bo'][None, :]
        for lp in layers]).astype(jnp.float32)

    return {
        'table': table, 'off_t': Vr, 'off_p': Vr + Vt,
        'pos': params['pos_emb'][0],                        # (max_seq_len, D)
        'wqkv': wqkv, 'bqkv': bqkv,
        'wo': st('wo').astype(bf16), 'bo': st('bo'),
        'ln1_g': st('ln1_g'), 'ln1_b': st('ln1_b'),
        'cross': cross,
        'ln2_g': st('ln2_g'), 'ln2_b': st('ln2_b'),
        'w1': (st('w1') * isq2).astype(bf16), 'b1': st('b1') * isq2,
        'w2': (st('w2') * isq2).astype(bf16), 'b2': st('b2'),
        'ln3_g': st('ln3_g'), 'ln3_b': st('ln3_b'),
        'head_w': head_w, 'head_b': head_b,
        'vocabs': (Vr, Vt, Vp),
    }


# ----------------------------- forward ---------------------------------------


def three_token_gpt_forward(prep, cfg, r_tokens, theta_tokens, phi_tokens):
    """r/theta/phi tokens: (B, T) int32. Returns (r_logits, theta_logits, phi_logits)."""
    B, T = r_tokens.shape
    D, F, L, H = cfg.d_model, cfg.d_ff, cfg.n_layers, cfg.n_heads
    N = B * T
    gen = _tpu_generation_defaults()
    TB = _pick_batch_tile(B, T, gen['row_cap'], gen['min_tiles'])
    rows = TB * T
    nb = B // TB
    v_pad = prep['table'].shape[0]
    h_pad = prep['head_w'].shape[1]

    ids = lambda t: t.reshape(N, 1).astype(jnp.int32)
    pos = prep['pos'][:T, :]                                 # (T, D), broadcast in-kernel

    # constant (weight) specs: full stacked block, constant index map -> DMA'd once,
    # VMEM-resident for the whole call.
    def const_spec(shape):
        zeros = (0,) * len(shape)
        return pl.BlockSpec(shape, lambda b, _z=zeros: _z)

    # rough VMEM budget (weights x2 buffers + activation intermediates + headroom),
    # clamped per generation.
    weight_keys = ('table', 'wqkv', 'bqkv', 'wo', 'bo', 'ln1_g', 'ln1_b', 'cross',
                   'ln2_g', 'ln2_b', 'w1', 'b1', 'w2', 'b2', 'ln3_g', 'ln3_b',
                   'head_w', 'head_b')
    weight_bytes = sum(int(prep[k].size) * prep[k].dtype.itemsize for k in weight_keys)
    act_bytes = (4 * rows * (8 * D + 2 * F)     # residual / qkv / attn / ffn intermediates
                 + 2 * rows * v_pad             # bf16 one-hot
                 + 8 * rows * h_pad             # double-buffered f32 logits block
                 + 16 * TB * T * T)             # live per-head score tensors
    vmem_limit = int(max(32 << 20,
                         min(gen['vmem_ceiling'],
                             2 * weight_bytes + act_bytes + (8 << 20))))

    logits = pl.pallas_call(
        functools.partial(_fused_forward_kernel, tb=TB, seq=T, n_heads=H,
                          n_layers=L, off_t=prep['off_t'], off_p=prep['off_p']),
        out_shape=jax.ShapeDtypeStruct((N, h_pad), jnp.float32),
        grid=(nb,),
        in_specs=[
            pl.BlockSpec((rows, 1), lambda b: (b, 0)),       # r ids
            pl.BlockSpec((rows, 1), lambda b: (b, 0)),       # theta ids
            pl.BlockSpec((rows, 1), lambda b: (b, 0)),       # phi ids
            const_spec((v_pad, D)),                          # fused embedding table
            const_spec((T, D)),                              # positional slice
            const_spec((L, D, 3 * D)), const_spec((L, 1, 3 * D)),   # wqkv, bqkv
            const_spec((L, D, D)), const_spec((L, 1, D)),            # wo, bo
            const_spec((L, 1, D)), const_spec((L, 1, D)),            # ln1 g, b
            const_spec((L, 1, D)),                                   # cross const
            const_spec((L, 1, D)), const_spec((L, 1, D)),            # ln2 g, b
            const_spec((L, D, F)), const_spec((L, 1, F)),            # w1, b1
            const_spec((L, F, D)), const_spec((L, 1, D)),            # w2, b2
            const_spec((L, 1, D)), const_spec((L, 1, D)),            # ln3 g, b
            const_spec((D, h_pad)), const_spec((1, h_pad)),          # fused heads
        ],
        out_specs=pl.BlockSpec((rows, h_pad), lambda b: (b, 0)),
        compiler_params=pltpu.CompilerParams(
            dimension_semantics=("parallel",),
            vmem_limit_bytes=vmem_limit),
    )(ids(r_tokens), ids(theta_tokens), ids(phi_tokens),
      prep['table'], pos,
      prep['wqkv'], prep['bqkv'], prep['wo'], prep['bo'],
      prep['ln1_g'], prep['ln1_b'], prep['cross'], prep['ln2_g'], prep['ln2_b'],
      prep['w1'], prep['b1'], prep['w2'], prep['b2'], prep['ln3_g'], prep['ln3_b'],
      prep['head_w'], prep['head_b'])

    Vr, Vt, Vp = prep['vocabs']
    r_logits = logits[:, :Vr].reshape(B, T, Vr)
    theta_logits = logits[:, Vr:Vr + Vt].reshape(B, T, Vt)
    phi_logits = logits[:, Vr + Vt:Vr + Vt + Vp].reshape(B, T, Vp)
    return r_logits, theta_logits, phi_logits


# ----------------------------- params ---------------------------------------


def init_params(key, cfg):
    D, F = cfg.d_model, cfg.d_ff
    keys = iter(jax.random.split(key, 16 + 16 * cfg.n_layers))
    nk = lambda: next(keys)
    nrm = lambda k, shape, std=0.02: (std * jax.random.normal(k, shape)).astype(jnp.float32)

    params = {
        'r_emb': nrm(nk(), (cfg.r_vocab_size, D)),
        'theta_emb': nrm(nk(), (cfg.theta_vocab_size, D)),
        'phi_emb': nrm(nk(), (cfg.phi_vocab_size, D)),
        'pos_emb': jnp.zeros((1, cfg.max_seq_len, D), jnp.float32),     # torch.zeros init
        'r_head_w': nrm(nk(), (D, cfg.r_vocab_size)),                   # stored (in, out)
        'r_head_b': jnp.zeros((1, cfg.r_vocab_size), jnp.float32),
        'theta_head_w': nrm(nk(), (D, cfg.theta_vocab_size)),
        'theta_head_b': jnp.zeros((1, cfg.theta_vocab_size), jnp.float32),
        'phi_head_w': nrm(nk(), (D, cfg.phi_vocab_size)),
        'phi_head_b': jnp.zeros((1, cfg.phi_vocab_size), jnp.float32),
        'layers': [],
    }
    for _ in range(cfg.n_layers):
        lp = {
            'wq': nrm(nk(), (D, D)), 'wk': nrm(nk(), (D, D)), 'wv': nrm(nk(), (D, D)),
            'bq': nrm(nk(), (1, D)), 'bk': nrm(nk(), (1, D)), 'bv': nrm(nk(), (1, D)),
            'wo': nrm(nk(), (D, D)), 'bo': nrm(nk(), (1, D)),
            'ln1_g': jnp.ones((1, D), jnp.float32), 'ln1_b': jnp.zeros((1, D), jnp.float32),
            # only the cross-attn params that can affect the zero-memory output:
            'cross_bv': nrm(nk(), (D,)), 'cross_wo': nrm(nk(), (D, D)), 'cross_bo': nrm(nk(), (D,)),
            'ln2_g': jnp.ones((1, D), jnp.float32), 'ln2_b': jnp.zeros((1, D), jnp.float32),
            'w1': nrm(nk(), (D, F)), 'b1': nrm(nk(), (1, F)),
            'w2': nrm(nk(), (F, D)), 'b2': nrm(nk(), (1, D)),
            'ln3_g': jnp.ones((1, D), jnp.float32), 'ln3_b': jnp.zeros((1, D), jnp.float32),
        }
        params['layers'].append(lp)
    return params


# ----------------------------- main ------------------------------------------


if __name__ == "__main__":
    cfg = ThreeTokenGPTConfig(r_vocab_size=16, theta_vocab_size=12, phi_vocab_size=20,
                              d_model=32, n_heads=4, n_layers=2, d_ff=64,
                              dropout=0.1, max_seq_len=16)
    B, T = 2, 8

    root = jax.random.PRNGKey(0)
    kp, kr, kt, kf = jax.random.split(root, 4)
    params = init_params(kp, cfg)
    prep = prepare_weights(params, cfg)

    r_tokens = jax.random.randint(kr, (B, T), 0, cfg.r_vocab_size, dtype=jnp.int32)
    theta_tokens = jax.random.randint(kt, (B, T), 0, cfg.theta_vocab_size, dtype=jnp.int32)
    phi_tokens = jax.random.randint(kf, (B, T), 0, cfg.phi_vocab_size, dtype=jnp.int32)

    r_logits, theta_logits, phi_logits = three_token_gpt_forward(
        prep, cfg, r_tokens, theta_tokens, phi_tokens)
    jax.block_until_ready((r_logits, theta_logits, phi_logits))

    assert r_logits.shape == (B, T, cfg.r_vocab_size)
    assert theta_logits.shape == (B, T, cfg.theta_vocab_size)
    assert phi_logits.shape == (B, T, cfg.phi_vocab_size)
    assert bool(jnp.all(jnp.isfinite(r_logits)))
    assert bool(jnp.all(jnp.isfinite(theta_logits)))
    assert bool(jnp.all(jnp.isfinite(phi_logits)))
    print("KERNEL_OK")
</pallas_src>

<mosaic_0001>
module attributes {stable_mosaic.version = 11 : i64} {
  func.func @_fused_forward_kernel(%arg0: i32, %arg1: memref<16x1xi32, #tpu.memory_space<vmem>>, %arg2: memref<16x1xi32, #tpu.memory_space<vmem>>, %arg3: memref<16x1xi32, #tpu.memory_space<vmem>>, %arg4: memref<128x32xbf16, #tpu.memory_space<vmem>>, %arg5: memref<8x32xf32, #tpu.memory_space<vmem>>, %arg6: memref<2x32x96xbf16, #tpu.memory_space<vmem>>, %arg7: memref<2x1x96xf32, #tpu.memory_space<vmem>>, %arg8: memref<2x32x32xbf16, #tpu.memory_space<vmem>>, %arg9: memref<2x1x32xf32, #tpu.memory_space<vmem>>, %arg10: memref<2x1x32xf32, #tpu.memory_space<vmem>>, %arg11: memref<2x1x32xf32, #tpu.memory_space<vmem>>, %arg12: memref<2x1x32xf32, #tpu.memory_space<vmem>>, %arg13: memref<2x1x32xf32, #tpu.memory_space<vmem>>, %arg14: memref<2x1x32xf32, #tpu.memory_space<vmem>>, %arg15: memref<2x32x64xbf16, #tpu.memory_space<vmem>>, %arg16: memref<2x1x64xf32, #tpu.memory_space<vmem>>, %arg17: memref<2x64x32xbf16, #tpu.memory_space<vmem>>, %arg18: memref<2x1x32xf32, #tpu.memory_space<vmem>>, %arg19: memref<2x1x32xf32, #tpu.memory_space<vmem>>, %arg20: memref<2x1x32xf32, #tpu.memory_space<vmem>>, %arg21: memref<32x128xbf16, #tpu.memory_space<vmem>>, %arg22: memref<1x128xf32, #tpu.memory_space<vmem>>, %arg23: memref<16x128xf32, #tpu.memory_space<vmem>>) attributes {dimension_semantics = [#tpu.dimension_semantics<parallel>], iteration_bounds = array<i64: 1>, scalar_prefetch = 0 : i64, scratch_operands = 0 : i64, tpu.core_type = #tpu.core_type<tc>, window_params = [{transform_indices = @transform_0, window_bounds = array<i64: 16, 1>}, {transform_indices = @transform_1, window_bounds = array<i64: 16, 1>}, {transform_indices = @transform_2, window_bounds = array<i64: 16, 1>}, {pipeline_mode = #tpu.pipeline_mode<synchronous>, transform_indices = @transform_3, window_bounds = array<i64: 128, 32>}, {pipeline_mode = #tpu.pipeline_mode<synchronous>, transform_indices = @transform_4, window_bounds = array<i64: 8, 32>}, {pipeline_mode = #tpu.pipeline_mode<synchronous>, transform_indices = @transform_5, window_bounds = array<i64: 2, 32, 96>}, {pipeline_mode = #tpu.pipeline_mode<synchronous>, transform_indices = @transform_6, window_bounds = array<i64: 2, 1, 96>}, {pipeline_mode = #tpu.pipeline_mode<synchronous>, transform_indices = @transform_7, window_bounds = array<i64: 2, 32, 32>}, {pipeline_mode = #tpu.pipeline_mode<synchronous>, transform_indices = @transform_8, window_bounds = array<i64: 2, 1, 32>}, {pipeline_mode = #tpu.pipeline_mode<synchronous>, transform_indices = @transform_9, window_bounds = array<i64: 2, 1, 32>}, {pipeline_mode = #tpu.pipeline_mode<synchronous>, transform_indices = @transform_10, window_bounds = array<i64: 2, 1, 32>}, {pipeline_mode = #tpu.pipeline_mode<synchronous>, transform_indices = @transform_11, window_bounds = array<i64: 2, 1, 32>}, {pipeline_mode = #tpu.pipeline_mode<synchronous>, transform_indices = @transform_12, window_bounds = array<i64: 2, 1, 32>}, {pipeline_mode = #tpu.pipeline_mode<synchronous>, transform_indices = @transform_13, window_bounds = array<i64: 2, 1, 32>}, {pipeline_mode = #tpu.pipeline_mode<synchronous>, transform_indices = @transform_14, window_bounds = array<i64: 2, 32, 64>}, {pipeline_mode = #tpu.pipeline_mode<synchronous>, transform_indices = @transform_15, window_bounds = array<i64: 2, 1, 64>}, {pipeline_mode = #tpu.pipeline_mode<synchronous>, transform_indices = @transform_16, window_bounds = array<i64: 2, 64, 32>}, {pipeline_mode = #tpu.pipeline_mode<synchronous>, transform_indices = @transform_17, window_bounds = array<i64: 2, 1, 32>}, {pipeline_mode = #tpu.pipeline_mode<synchronous>, transform_indices = @transform_18, window_bounds = array<i64: 2, 1, 32>}, {pipeline_mode = #tpu.pipeline_mode<synchronous>, transform_indices = @transform_19, window_bounds = array<i64: 2, 1, 32>}, {pipeline_mode = #tpu.pipeline_mode<synchronous>, transform_indices = @transform_20, window_bounds = array<i64: 32, 128>}, {pipeline_mode = #tpu.pipeline_mode<synchronous>, transform_indices = @transform_21, window_bounds = array<i64: 1, 128>}, {transform_indices = @transform_22, window_bounds = array<i64: 16, 128>}]} {
    %0 = tpu.iota {dimensions = array<i32: 1>} : vector<16x128xi32>
    %c0 = arith.constant 0 : index
    %c0_0 = arith.constant 0 : index
    %1 = vector.load %arg1[%c0, %c0_0] : memref<16x1xi32, #tpu.memory_space<vmem>>, vector<16x1xi32>
    %2 = vector.broadcast %1 : vector<16x1xi32> to vector<16x128xi32>
    %3 = arith.cmpi eq, %2, %0 : vector<16x128xi32>
    %c0_1 = arith.constant 0 : index
    %c0_2 = arith.constant 0 : index
    %4 = vector.load %arg2[%c0_1, %c0_2] : memref<16x1xi32, #tpu.memory_space<vmem>>, vector<16x1xi32>
    %c16_i32 = arith.constant 16 : i32
    %5 = vector.broadcast %c16_i32 : i32 to vector<16x1xi32>
    %6 = arith.addi %4, %5 : vector<16x1xi32>
    %7 = vector.broadcast %6 : vector<16x1xi32> to vector<16x128xi32>
    %8 = arith.cmpi eq, %7, %0 : vector<16x128xi32>
    %9 = arith.ori %3, %8 : vector<16x128xi1>
    %c0_3 = arith.constant 0 : index
    %c0_4 = arith.constant 0 : index
    %10 = vector.load %arg3[%c0_3, %c0_4] : memref<16x1xi32, #tpu.memory_space<vmem>>, vector<16x1xi32>
    %c28_i32 = arith.constant 28 : i32
    %11 = vector.broadcast %c28_i32 : i32 to vector<16x1xi32>
    %12 = arith.addi %10, %11 : vector<16x1xi32>
    %13 = vector.broadcast %12 : vector<16x1xi32> to vector<16x128xi32>
    %14 = arith.cmpi eq, %13, %0 : vector<16x128xi32>
    %15 = arith.ori %9, %14 : vector<16x128xi1>
    %16 = arith.extui %15 : vector<16x128xi1> to vector<16x128xi32>
    %17 = arith.sitofp %16 : vector<16x128xi32> to vector<16x128xf32>
    %18 = arith.truncf %17 : vector<16x128xf32> to vector<16x128xbf16>
    %c0_5 = arith.constant 0 : index
    %c0_6 = arith.constant 0 : index
    %19 = vector.load %arg4[%c0_5, %c0_6] : memref<128x32xbf16, #tpu.memory_space<vmem>>, vector<128x32xbf16>
    %cst = arith.constant dense<0.000000e+00> : vector<16x32xf32>
    %20 = tpu.matmul %18, %19, %cst {dimension_numbers = #tpu.dot_dimension_numbers<[1], [0], [0], [1], [0, 0, 1, 1], [], []>} : vector<16x128xbf16>, vector<128x32xbf16>, vector<16x32xf32> -> vector<16x32xf32>
    %21 = vector.shape_cast %20 : vector<16x32xf32> to vector<2x8x32xf32>
    %c0_7 = arith.constant 0 : index
    %c0_8 = arith.constant 0 : index
    %22 = vector.load %arg5[%c0_7, %c0_8] : memref<8x32xf32, #tpu.memory_space<vmem>>, vector<8x32xf32>
    %23 = vector.shape_cast %22 : vector<8x32xf32> to vector<1x8x32xf32>
    %24 = vector.broadcast %23 : vector<1x8x32xf32> to vector<2x8x32xf32>
    %25 = arith.addf %21, %24 : vector<2x8x32xf32>
    %26 = vector.shape_cast %25 : vector<2x8x32xf32> to vector<16x32xf32>
    %27 = tpu.iota {dimensions = array<i32: 0>} : vector<8x8xi32>
    %28 = tpu.iota {dimensions = array<i32: 1>} : vector<8x8xi32>
    %29 = arith.cmpi sge, %27, %28 : vector<8x8xi32>
    %30 = vector.shape_cast %29 : vector<8x8xi1> to vector<1x8x8xi1>
    %c0_i32 = arith.constant 0 : i32
    %c2_i32 = arith.constant 2 : i32
    %31 = arith.addi %c0_i32, %c2_i32 : i32
    %c1_i32 = arith.constant 1 : i32
    %32 = scf.for %arg24 = %c0_i32 to %31 step %c1_i32 iter_args(%arg25 = %26) -> (vector<16x32xf32>)  : i32 {
      %40 = arith.truncf %arg25 : vector<16x32xf32> to vector<16x32xbf16>
      %41 = arith.index_cast %arg24 : i32 to index
      %c0_17 = arith.constant 0 : index
      %c0_18 = arith.constant 0 : index
      %42 = vector.load %arg6[%41, %c0_17, %c0_18] : memref<2x32x96xbf16, #tpu.memory_space<vmem>>, vector<1x32x96xbf16>
      %43 = vector.shape_cast %42 : vector<1x32x96xbf16> to vector<32x96xbf16>
      %cst_19 = arith.constant dense<0.000000e+00> : vector<16x96xf32>
      %44 = tpu.matmul %40, %43, %cst_19 {dimension_numbers = #tpu.dot_dimension_numbers<[1], [0], [0], [1], [0, 0, 1, 1], [], []>} : vector<16x32xbf16>, vector<32x96xbf16>, vector<16x96xf32> -> vector<16x96xf32>
      %45 = arith.index_cast %arg24 : i32 to index
      %c0_20 = arith.constant 0 : index
      %c0_21 = arith.constant 0 : index
      %46 = vector.load %arg7[%45, %c0_20, %c0_21] : memref<2x1x96xf32, #tpu.memory_space<vmem>>, vector<1x1x96xf32>
      %47 = vector.shape_cast %46 : vector<1x1x96xf32> to vector<1x96xf32>
      %48 = vector.broadcast %47 : vector<1x96xf32> to vector<16x96xf32>
      %49 = arith.addf %44, %48 : vector<16x96xf32>
      %50 = arith.truncf %49 : vector<16x96xf32> to vector<16x96xbf16>
      %51 = vector.extract_strided_slice %50 {offsets = [0, 0], sizes = [16, 8], strides = [1, 1]} : vector<16x96xbf16> to vector<16x8xbf16>
      %52 = vector.shape_cast %51 : vector<16x8xbf16> to vector<2x8x8xbf16>
      %53 = vector.extract_strided_slice %50 {offsets = [0, 32], sizes = [16, 8], strides = [1, 1]} : vector<16x96xbf16> to vector<16x8xbf16>
      %54 = vector.shape_cast %53 : vector<16x8xbf16> to vector<2x8x8xbf16>
      %55 = vector.extract_strided_slice %50 {offsets = [0, 64], sizes = [16, 8], strides = [1, 1]} : vector<16x96xbf16> to vector<16x8xbf16>
      %56 = vector.shape_cast %55 : vector<16x8xbf16> to vector<2x8x8xbf16>
      "tpu.trace_start"() <{level = 10 : i32, message = "bqd,bkd->bqk"}> : () -> ()
      %cst_22 = arith.constant dense<0.000000e+00> : vector<2x8x8xf32>
      %57 = tpu.matmul %52, %54, %cst_22 {dimension_numbers = #tpu.dot_dimension_numbers<[2], [2], [1], [1], [0, 0, 0, 1, 1, 1], [0], [0]>} : vector<2x8x8xbf16>, vector<2x8x8xbf16>, vector<2x8x8xf32> -> vector<2x8x8xf32>
      %cst_23 = arith.constant -1.000000e+30 : f32
      "tpu.trace_stop"() : () -> ()
      %58 = vector.shape_cast %30 : vector<1x8x8xi1> to vector<1x8x8xi1>
      %59 = vector.broadcast %58 : vector<1x8x8xi1> to vector<2x8x8xi1>
      %60 = vector.broadcast %cst_23 : f32 to vector<2x8x8xf32>
      %61 = arith.select %59, %57, %60 : vector<2x8x8xi1>, vector<2x8x8xf32>
      %cst_24 = arith.constant dense<0xFF800000> : vector<2x8xf32>
      %62 = vector.multi_reduction <maximumf>, %61, %cst_24 [2] : vector<2x8x8xf32> to vector<2x8xf32>
      %63 = vector.shape_cast %62 : vector<2x8xf32> to vector<2x8x1xf32>
      %64 = vector.broadcast %63 : vector<2x8x1xf32> to vector<2x8x8xf32>
      %65 = arith.subf %61, %64 : vector<2x8x8xf32>
      %66 = math.exp %65 : vector<2x8x8xf32>
      %cst_25 = arith.constant dense<0.000000e+00> : vector<2x8xf32>
      %67 = vector.multi_reduction <add>, %66, %cst_25 [2] : vector<2x8x8xf32> to vector<2x8xf32>
      %68 = vector.shape_cast %67 : vector<2x8xf32> to vector<2x8x1xf32>
      %69 = tpu.reciprocal %68 {approx = true} : vector<2x8x1xf32> -> vector<2x8x1xf32>
      %70 = vector.broadcast %69 : vector<2x8x1xf32> to vector<2x8x8xf32>
      %71 = arith.mulf %66, %70 : vector<2x8x8xf32>
      %72 = arith.truncf %71 : vector<2x8x8xf32> to vector<2x8x8xbf16>
      "tpu.trace_start"() <{level = 10 : i32, message = "bqk,bkd->bqd"}> : () -> ()
      %cst_26 = arith.constant dense<0.000000e+00> : vector<2x8x8xf32>
      %73 = tpu.matmul %72, %56, %cst_26 {dimension_numbers = #tpu.dot_dimension_numbers<[2], [1], [1], [2], [0, 0, 0, 1, 1, 2], [0], [0]>} : vector<2x8x8xbf16>, vector<2x8x8xbf16>, vector<2x8x8xf32> -> vector<2x8x8xf32>
      "tpu.trace_stop"() : () -> ()
      %74 = vector.shape_cast %73 : vector<2x8x8xf32> to vector<16x8xf32>
      %75 = vector.extract_strided_slice %50 {offsets = [0, 8], sizes = [16, 8], strides = [1, 1]} : vector<16x96xbf16> to vector<16x8xbf16>
      %76 = vector.shape_cast %75 : vector<16x8xbf16> to vector<2x8x8xbf16>
      %77 = vector.extract_strided_slice %50 {offsets = [0, 40], sizes = [16, 8], strides = [1, 1]} : vector<16x96xbf16> to vector<16x8xbf16>
      %78 = vector.shape_cast %77 : vector<16x8xbf16> to vector<2x8x8xbf16>
      %79 = vector.extract_strided_slice %50 {offsets = [0, 72], sizes = [16, 8], strides = [1, 1]} : vector<16x96xbf16> to vector<16x8xbf16>
      %80 = vector.shape_cast %79 : vector<16x8xbf16> to vector<2x8x8xbf16>
      "tpu.trace_start"() <{level = 10 : i32, message = "bqd,bkd->bqk"}> : () -> ()
      %cst_27 = arith.constant dense<0.000000e+00> : vector<2x8x8xf32>
      %81 = tpu.matmul %76, %78, %cst_27 {dimension_numbers = #tpu.dot_dimension_numbers<[2], [2], [1], [1], [0, 0, 0, 1, 1, 1], [0], [0]>} : vector<2x8x8xbf16>, vector<2x8x8xbf16>, vector<2x8x8xf32> -> vector<2x8x8xf32>
      %cst_28 = arith.constant -1.000000e+30 : f32
      "tpu.trace_stop"() : () -> ()
      %82 = vector.shape_cast %30 : vector<1x8x8xi1> to vector<1x8x8xi1>
      %83 = vector.broadcast %82 : vector<1x8x8xi1> to vector<2x8x8xi1>
      %84 = vector.broadcast %cst_28 : f32 to vector<2x8x8xf32>
      %85 = arith.select %83, %81, %84 : vector<2x8x8xi1>, vector<2x8x8xf32>
      %cst_29 = arith.constant dense<0xFF800000> : vector<2x8xf32>
      %86 = vector.multi_reduction <maximumf>, %85, %cst_29 [2] : vector<2x8x8xf32> to vector<2x8xf32>
      %87 = vector.shape_cast %86 : vector<2x8xf32> to vector<2x8x1xf32>
      %88 = vector.broadcast %87 : vector<2x8x1xf32> to vector<2x8x8xf32>
      %89 = arith.subf %85, %88 : vector<2x8x8xf32>
      %90 = math.exp %89 : vector<2x8x8xf32>
      %cst_30 = arith.constant dense<0.000000e+00> : vector<2x8xf32>
      %91 = vector.multi_reduction <add>, %90, %cst_30 [2] : vector<2x8x8xf32> to vector<2x8xf32>
      %92 = vector.shape_cast %91 : vector<2x8xf32> to vector<2x8x1xf32>
      %93 = tpu.reciprocal %92 {approx = true} : vector<2x8x1xf32> -> vector<2x8x1xf32>
      %94 = vector.broadcast %93 : vector<2x8x1xf32> to vector<2x8x8xf32>
      %95 = arith.mulf %90, %94 : vector<2x8x8xf32>
      %96 = arith.truncf %95 : vector<2x8x8xf32> to vector<2x8x8xbf16>
      "tpu.trace_start"() <{level = 10 : i32, message = "bqk,bkd->bqd"}> : () -> ()
      %cst_31 = arith.constant dense<0.000000e+00> : vector<2x8x8xf32>
      %97 = tpu.matmul %96, %80, %cst_31 {dimension_numbers = #tpu.dot_dimension_numbers<[2], [1], [1], [2], [0, 0, 0, 1, 1, 2], [0], [0]>} : vector<2x8x8xbf16>, vector<2x8x8xbf16>, vector<2x8x8xf32> -> vector<2x8x8xf32>
      "tpu.trace_stop"() : () -> ()
      %98 = vector.shape_cast %97 : vector<2x8x8xf32> to vector<16x8xf32>
      %99 = vector.extract_strided_slice %50 {offsets = [0, 16], sizes = [16, 8], strides = [1, 1]} : vector<16x96xbf16> to vector<16x8xbf16>
      %100 = vector.shape_cast %99 : vector<16x8xbf16> to vector<2x8x8xbf16>
      %101 = vector.extract_strided_slice %50 {offsets = [0, 48], sizes = [16, 8], strides = [1, 1]} : vector<16x96xbf16> to vector<16x8xbf16>
      %102 = vector.shape_cast %101 : vector<16x8xbf16> to vector<2x8x8xbf16>
      %103 = vector.extract_strided_slice %50 {offsets = [0, 80], sizes = [16, 8], strides = [1, 1]} : vector<16x96xbf16> to vector<16x8xbf16>
      %104 = vector.shape_cast %103 : vector<16x8xbf16> to vector<2x8x8xbf16>
      "tpu.trace_start"() <{level = 10 : i32, message = "bqd,bkd->bqk"}> : () -> ()
      %cst_32 = arith.constant dense<0.000000e+00> : vector<2x8x8xf32>
      %105 = tpu.matmul %100, %102, %cst_32 {dimension_numbers = #tpu.dot_dimension_numbers<[2], [2], [1], [1], [0, 0, 0, 1, 1, 1], [0], [0]>} : vector<2x8x8xbf16>, vector<2x8x8xbf16>, vector<2x8x8xf32> -> vector<2x8x8xf32>
      %cst_33 = arith.constant -1.000000e+30 : f32
      "tpu.trace_stop"() : () -> ()
      %106 = vector.shape_cast %30 : vector<1x8x8xi1> to vector<1x8x8xi1>
      %107 = vector.broadcast %106 : vector<1x8x8xi1> to vector<2x8x8xi1>
      %108 = vector.broadcast %cst_33 : f32 to vector<2x8x8xf32>
      %109 = arith.select %107, %105, %108 : vector<2x8x8xi1>, vector<2x8x8xf32>
      %cst_34 = arith.constant dense<0xFF800000> : vector<2x8xf32>
      %110 = vector.multi_reduction <maximumf>, %109, %cst_34 [2] : vector<2x8x8xf32> to vector<2x8xf32>
      %111 = vector.shape_cast %110 : vector<2x8xf32> to vector<2x8x1xf32>
      %112 = vector.broadcast %111 : vector<2x8x1xf32> to vector<2x8x8xf32>
      %113 = arith.subf %109, %112 : vector<2x8x8xf32>
      %114 = math.exp %113 : vector<2x8x8xf32>
      %cst_35 = arith.constant dense<0.000000e+00> : vector<2x8xf32>
      %115 = vector.multi_reduction <add>, %114, %cst_35 [2] : vector<2x8x8xf32> to vector<2x8xf32>
      %116 = vector.shape_cast %115 : vector<2x8xf32> to vector<2x8x1xf32>
      %117 = tpu.reciprocal %116 {approx = true} : vector<2x8x1xf32> -> vector<2x8x1xf32>
      %118 = vector.broadcast %117 : vector<2x8x1xf32> to vector<2x8x8xf32>
      %119 = arith.mulf %114, %118 : vector<2x8x8xf32>
      %120 = arith.truncf %119 : vector<2x8x8xf32> to vector<2x8x8xbf16>
      "tpu.trace_start"() <{level = 10 : i32, message = "bqk,bkd->bqd"}> : () -> ()
      %cst_36 = arith.constant dense<0.000000e+00> : vector<2x8x8xf32>
      %121 = tpu.matmul %120, %104, %cst_36 {dimension_numbers = #tpu.dot_dimension_numbers<[2], [1], [1], [2], [0, 0, 0, 1, 1, 2], [0], [0]>} : vector<2x8x8xbf16>, vector<2x8x8xbf16>, vector<2x8x8xf32> -> vector<2x8x8xf32>
      "tpu.trace_stop"() : () -> ()
      %122 = vector.shape_cast %121 : vector<2x8x8xf32> to vector<16x8xf32>
      %123 = vector.extract_strided_slice %50 {offsets = [0, 24], sizes = [16, 8], strides = [1, 1]} : vector<16x96xbf16> to vector<16x8xbf16>
      %124 = vector.shape_cast %123 : vector<16x8xbf16> to vector<2x8x8xbf16>
      %125 = vector.extract_strided_slice %50 {offsets = [0, 56], sizes = [16, 8], strides = [1, 1]} : vector<16x96xbf16> to vector<16x8xbf16>
      %126 = vector.shape_cast %125 : vector<16x8xbf16> to vector<2x8x8xbf16>
      %127 = vector.extract_strided_slice %50 {offsets = [0, 88], sizes = [16, 8], strides = [1, 1]} : vector<16x96xbf16> to vector<16x8xbf16>
      %128 = vector.shape_cast %127 : vector<16x8xbf16> to vector<2x8x8xbf16>
      "tpu.trace_start"() <{level = 10 : i32, message = "bqd,bkd->bqk"}> : () -> ()
      %cst_37 = arith.constant dense<0.000000e+00> : vector<2x8x8xf32>
      %129 = tpu.matmul %124, %126, %cst_37 {dimension_numbers = #tpu.dot_dimension_numbers<[2], [2], [1], [1], [0, 0, 0, 1, 1, 1], [0], [0]>} : vector<2x8x8xbf16>, vector<2x8x8xbf16>, vector<2x8x8xf32> -> vector<2x8x8xf32>
      %cst_38 = arith.constant -1.000000e+30 : f32
      "tpu.trace_stop"() : () -> ()
      %130 = vector.shape_cast %30 : vector<1x8x8xi1> to vector<1x8x8xi1>
      %131 = vector.broadcast %130 : vector<1x8x8xi1> to vector<2x8x8xi1>
      %132 = vector.broadcast %cst_38 : f32 to vector<2x8x8xf32>
      %133 = arith.select %131, %129, %132 : vector<2x8x8xi1>, vector<2x8x8xf32>
      %cst_39 = arith.constant dense<0xFF800000> : vector<2x8xf32>
      %134 = vector.multi_reduction <maximumf>, %133, %cst_39 [2] : vector<2x8x8xf32> to vector<2x8xf32>
      %135 = vector.shape_cast %134 : vector<2x8xf32> to vector<2x8x1xf32>
      %136 = vector.broadcast %135 : vector<2x8x1xf32> to vector<2x8x8xf32>
      %137 = arith.subf %133, %136 : vector<2x8x8xf32>
      %138 = math.exp %137 : vector<2x8x8xf32>
      %cst_40 = arith.constant dense<0.000000e+00> : vector<2x8xf32>
      %139 = vector.multi_reduction <add>, %138, %cst_40 [2] : vector<2x8x8xf32> to vector<2x8xf32>
      %140 = vector.shape_cast %139 : vector<2x8xf32> to vector<2x8x1xf32>
      %141 = tpu.reciprocal %140 {approx = true} : vector<2x8x1xf32> -> vector<2x8x1xf32>
      %142 = vector.broadcast %141 : vector<2x8x1xf32> to vector<2x8x8xf32>
      %143 = arith.mulf %138, %142 : vector<2x8x8xf32>
      %144 = arith.truncf %143 : vector<2x8x8xf32> to vector<2x8x8xbf16>
      "tpu.trace_start"() <{level = 10 : i32, message = "bqk,bkd->bqd"}> : () -> ()
      %cst_41 = arith.constant dense<0.000000e+00> : vector<2x8x8xf32>
      %145 = tpu.matmul %144, %128, %cst_41 {dimension_numbers = #tpu.dot_dimension_numbers<[2], [1], [1], [2], [0, 0, 0, 1, 1, 2], [0], [0]>} : vector<2x8x8xbf16>, vector<2x8x8xbf16>, vector<2x8x8xf32> -> vector<2x8x8xf32>
      "tpu.trace_stop"() : () -> ()
      %146 = vector.shape_cast %145 : vector<2x8x8xf32> to vector<16x8xf32>
      %147 = tpu.concatenate %74, %98, %122, %146 in 1 : vector<16x8xf32>, vector<16x8xf32>, vector<16x8xf32>, vector<16x8xf32> -> vector<16x32xf32>
      %148 = arith.truncf %147 : vector<16x32xf32> to vector<16x32xbf16>
      %149 = arith.index_cast %arg24 : i32 to index
      %c0_42 = arith.constant 0 : index
      %c0_43 = arith.constant 0 : index
      %150 = vector.load %arg8[%149, %c0_42, %c0_43] : memref<2x32x32xbf16, #tpu.memory_space<vmem>>, vector<1x32x32xbf16>
      %151 = vector.shape_cast %150 : vector<1x32x32xbf16> to vector<32x32xbf16>
      %cst_44 = arith.constant dense<0.000000e+00> : vector<16x32xf32>
      %152 = tpu.matmul %148, %151, %cst_44 {dimension_numbers = #tpu.dot_dimension_numbers<[1], [0], [0], [1], [0, 0, 1, 1], [], []>} : vector<16x32xbf16>, vector<32x32xbf16>, vector<16x32xf32> -> vector<16x32xf32>
      %153 = arith.index_cast %arg24 : i32 to index
      %c0_45 = arith.constant 0 : index
      %c0_46 = arith.constant 0 : index
      %154 = vector.load %arg9[%153, %c0_45, %c0_46] : memref<2x1x32xf32, #tpu.memory_space<vmem>>, vector<1x1x32xf32>
      %155 = vector.shape_cast %154 : vector<1x1x32xf32> to vector<1x32xf32>
      %156 = vector.broadcast %155 : vector<1x32xf32> to vector<16x32xf32>
      %157 = arith.addf %152, %156 : vector<16x32xf32>
      %158 = arith.addf %arg25, %157 : vector<16x32xf32>
      %159 = arith.index_cast %arg24 : i32 to index
      %c0_47 = arith.constant 0 : index
      %c0_48 = arith.constant 0 : index
      %160 = vector.load %arg10[%159, %c0_47, %c0_48] : memref<2x1x32xf32, #tpu.memory_space<vmem>>, vector<1x1x32xf32>
      %161 = vector.shape_cast %160 : vector<1x1x32xf32> to vector<1x32xf32>
      %162 = arith.index_cast %arg24 : i32 to index
      %c0_49 = arith.constant 0 : index
      %c0_50 = arith.constant 0 : index
      %163 = vector.load %arg11[%162, %c0_49, %c0_50] : memref<2x1x32xf32, #tpu.memory_space<vmem>>, vector<1x1x32xf32>
      %164 = vector.shape_cast %163 : vector<1x1x32xf32> to vector<1x32xf32>
      %cst_51 = arith.constant dense<0.000000e+00> : vector<16xf32>
      %165 = vector.multi_reduction <add>, %158, %cst_51 [1] : vector<16x32xf32> to vector<16xf32>
      %166 = vector.shape_cast %165 : vector<16xf32> to vector<16x1xf32>
      %cst_52 = arith.constant 3.200000e+01 : f32
      %167 = vector.broadcast %cst_52 : f32 to vector<16x1xf32>
      %168 = arith.divf %166, %167 : vector<16x1xf32>
      %169 = vector.broadcast %168 : vector<16x1xf32> to vector<16x32xf32>
      %170 = arith.subf %158, %169 : vector<16x32xf32>
      %171 = vector.broadcast %168 : vector<16x1xf32> to vector<16x32xf32>
      %172 = arith.subf %158, %171 : vector<16x32xf32>
      %173 = arith.mulf %170, %172 : vector<16x32xf32>
      %cst_53 = arith.constant dense<0.000000e+00> : vector<16xf32>
      %174 = vector.multi_reduction <add>, %173, %cst_53 [1] : vector<16x32xf32> to vector<16xf32>
      %175 = vector.shape_cast %174 : vector<16xf32> to vector<16x1xf32>
      %cst_54 = arith.constant 3.200000e+01 : f32
      %176 = vector.broadcast %cst_54 : f32 to vector<16x1xf32>
      %177 = arith.divf %175, %176 : vector<16x1xf32>
      %178 = vector.broadcast %168 : vector<16x1xf32> to vector<16x32xf32>
      %179 = arith.subf %158, %178 : vector<16x32xf32>
      %cst_55 = arith.constant 9.99999974E-6 : f32
      %180 = vector.broadcast %cst_55 : f32 to vector<16x1xf32>
      %181 = arith.addf %177, %180 : vector<16x1xf32>
      %182 = math.rsqrt %181 : vector<16x1xf32>
      %183 = vector.broadcast %182 : vector<16x1xf32> to vector<16x32xf32>
      %184 = arith.mulf %179, %183 : vector<16x32xf32>
      %185 = vector.broadcast %161 : vector<1x32xf32> to vector<16x32xf32>
      %186 = arith.mulf %184, %185 : vector<16x32xf32>
      %187 = vector.broadcast %164 : vector<1x32xf32> to vector<16x32xf32>
      %188 = arith.addf %186, %187 : vector<16x32xf32>
      %189 = arith.index_cast %arg24 : i32 to index
      %c0_56 = arith.constant 0 : index
      %c0_57 = arith.constant 0 : index
      %190 = vector.load %arg12[%189, %c0_56, %c0_57] : memref<2x1x32xf32, #tpu.memory_space<vmem>>, vector<1x1x32xf32>
      %191 = vector.shape_cast %190 : vector<1x1x32xf32> to vector<1x32xf32>
      %192 = vector.broadcast %191 : vector<1x32xf32> to vector<16x32xf32>
      %193 = arith.addf %188, %192 : vector<16x32xf32>
      %194 = arith.index_cast %arg24 : i32 to index
      %c0_58 = arith.constant 0 : index
      %c0_59 = arith.constant 0 : index
      %195 = vector.load %arg13[%194, %c0_58, %c0_59] : memref<2x1x32xf32, #tpu.memory_space<vmem>>, vector<1x1x32xf32>
      %196 = vector.shape_cast %195 : vector<1x1x32xf32> to vector<1x32xf32>
      %197 = arith.index_cast %arg24 : i32 to index
      %c0_60 = arith.constant 0 : index
      %c0_61 = arith.constant 0 : index
      %198 = vector.load %arg14[%197, %c0_60, %c0_61] : memref<2x1x32xf32, #tpu.memory_space<vmem>>, vector<1x1x32xf32>
      %199 = vector.shape_cast %198 : vector<1x1x32xf32> to vector<1x32xf32>
      %cst_62 = arith.constant dense<0.000000e+00> : vector<16xf32>
      %200 = vector.multi_reduction <add>, %193, %cst_62 [1] : vector<16x32xf32> to vector<16xf32>
      %201 = vector.shape_cast %200 : vector<16xf32> to vector<16x1xf32>
      %cst_63 = arith.constant 3.200000e+01 : f32
      %202 = vector.broadcast %cst_63 : f32 to vector<16x1xf32>
      %203 = arith.divf %201, %202 : vector<16x1xf32>
      %204 = vector.broadcast %203 : vector<16x1xf32> to vector<16x32xf32>
      %205 = arith.subf %193, %204 : vector<16x32xf32>
      %206 = vector.broadcast %203 : vector<16x1xf32> to vector<16x32xf32>
      %207 = arith.subf %193, %206 : vector<16x32xf32>
      %208 = arith.mulf %205, %207 : vector<16x32xf32>
      %cst_64 = arith.constant dense<0.000000e+00> : vector<16xf32>
      %209 = vector.multi_reduction <add>, %208, %cst_64 [1] : vector<16x32xf32> to vector<16xf32>
      %210 = vector.shape_cast %209 : vector<16xf32> to vector<16x1xf32>
      %cst_65 = arith.constant 3.200000e+01 : f32
      %211 = vector.broadcast %cst_65 : f32 to vector<16x1xf32>
      %212 = arith.divf %210, %211 : vector<16x1xf32>
      %213 = vector.broadcast %203 : vector<16x1xf32> to vector<16x32xf32>
      %214 = arith.subf %193, %213 : vector<16x32xf32>
      %cst_66 = arith.constant 9.99999974E-6 : f32
      %215 = vector.broadcast %cst_66 : f32 to vector<16x1xf32>
      %216 = arith.addf %212, %215 : vector<16x1xf32>
      %217 = math.rsqrt %216 : vector<16x1xf32>
      %218 = vector.broadcast %217 : vector<16x1xf32> to vector<16x32xf32>
      %219 = arith.mulf %214, %218 : vector<16x32xf32>
      %220 = vector.broadcast %196 : vector<1x32xf32> to vector<16x32xf32>
      %221 = arith.mulf %219, %220 : vector<16x32xf32>
      %222 = vector.broadcast %199 : vector<1x32xf32> to vector<16x32xf32>
      %223 = arith.addf %221, %222 : vector<16x32xf32>
      %224 = arith.truncf %223 : vector<16x32xf32> to vector<16x32xbf16>
      %225 = arith.index_cast %arg24 : i32 to index
      %c0_67 = arith.constant 0 : index
      %c0_68 = arith.constant 0 : index
      %226 = vector.load %arg15[%225, %c0_67, %c0_68] : memref<2x32x64xbf16, #tpu.memory_space<vmem>>, vector<1x32x64xbf16>
      %227 = vector.shape_cast %226 : vector<1x32x64xbf16> to vector<32x64xbf16>
      %cst_69 = arith.constant dense<0.000000e+00> : vector<16x64xf32>
      %228 = tpu.matmul %224, %227, %cst_69 {dimension_numbers = #tpu.dot_dimension_numbers<[1], [0], [0], [1], [0, 0, 1, 1], [], []>} : vector<16x32xbf16>, vector<32x64xbf16>, vector<16x64xf32> -> vector<16x64xf32>
      %229 = arith.index_cast %arg24 : i32 to index
      %c0_70 = arith.constant 0 : index
      %c0_71 = arith.constant 0 : index
      %230 = vector.load %arg16[%229, %c0_70, %c0_71] : memref<2x1x64xf32, #tpu.memory_space<vmem>>, vector<1x1x64xf32>
      %231 = vector.shape_cast %230 : vector<1x1x64xf32> to vector<1x64xf32>
      %232 = vector.broadcast %231 : vector<1x64xf32> to vector<16x64xf32>
      %233 = arith.addf %228, %232 : vector<16x64xf32>
      %234 = math.absf %233 : vector<16x64xf32>
      %cst_72 = arith.constant 0.327591091 : f32
      %235 = vector.broadcast %cst_72 : f32 to vector<16x64xf32>
      %236 = arith.mulf %235, %234 : vector<16x64xf32>
      %cst_73 = arith.constant 1.000000e+00 : f32
      %237 = vector.broadcast %cst_73 : f32 to vector<16x64xf32>
      %238 = arith.addf %237, %236 : vector<16x64xf32>
      %cst_74 = arith.constant 1.000000e+00 : f32
      %239 = vector.broadcast %cst_74 : f32 to vector<16x64xf32>
      %240 = arith.divf %239, %238 : vector<16x64xf32>
      %cst_75 = arith.constant 1.06140542 : f32
      %241 = vector.broadcast %cst_75 : f32 to vector<16x64xf32>
      %242 = arith.mulf %241, %240 : vector<16x64xf32>
      %cst_76 = arith.constant -1.45315206 : f32
      %243 = vector.broadcast %cst_76 : f32 to vector<16x64xf32>
      %244 = arith.addf %242, %243 : vector<16x64xf32>
      %245 = arith.mulf %244, %240 : vector<16x64xf32>
      %cst_77 = arith.constant 1.42141378 : f32
      %246 = vector.broadcast %cst_77 : f32 to vector<16x64xf32>
      %247 = arith.addf %245, %246 : vector<16x64xf32>
      %248 = arith.mulf %247, %240 : vector<16x64xf32>
      %cst_78 = arith.constant -0.284496725 : f32
      %249 = vector.broadcast %cst_78 : f32 to vector<16x64xf32>
      %250 = arith.addf %248, %249 : vector<16x64xf32>
      %251 = arith.mulf %250, %240 : vector<16x64xf32>
      %cst_79 = arith.constant 0.254829586 : f32
      %252 = vector.broadcast %cst_79 : f32 to vector<16x64xf32>
      %253 = arith.addf %251, %252 : vector<16x64xf32>
      %254 = arith.mulf %253, %240 : vector<16x64xf32>
      %cst_80 = arith.constant 0.000000e+00 : f32
      %255 = vector.broadcast %cst_80 : f32 to vector<16x64xf32>
      %256 = arith.subf %255, %234 : vector<16x64xf32>
      %257 = arith.mulf %256, %234 : vector<16x64xf32>
      %258 = math.exp %257 : vector<16x64xf32>
      %259 = arith.mulf %254, %258 : vector<16x64xf32>
      %cst_81 = arith.constant 1.000000e+00 : f32
      %260 = vector.broadcast %cst_81 : f32 to vector<16x64xf32>
      %261 = arith.subf %260, %259 : vector<16x64xf32>
      %cst_82 = arith.constant 0.000000e+00 : f32
      %262 = vector.broadcast %cst_82 : f32 to vector<16x64xf32>
      %263 = arith.cmpf oge, %233, %262 : vector<16x64xf32>
      %cst_83 = arith.constant 0.000000e+00 : f32
      %264 = vector.broadcast %cst_83 : f32 to vector<16x64xf32>
      %265 = arith.subf %264, %261 : vector<16x64xf32>
      %266 = arith.select %263, %261, %265 : vector<16x64xi1>, vector<16x64xf32>
      %cst_84 = arith.constant 1.000000e+00 : f32
      %267 = vector.broadcast %cst_84 : f32 to vector<16x64xf32>
      %268 = arith.addf %267, %266 : vector<16x64xf32>
      %269 = arith.mulf %233, %268 : vector<16x64xf32>
      %270 = arith.truncf %269 : vector<16x64xf32> to vector<16x64xbf16>
      %271 = arith.index_cast %arg24 : i32 to index
      %c0_85 = arith.constant 0 : index
      %c0_86 = arith.constant 0 : index
      %272 = vector.load %arg17[%271, %c0_85, %c0_86] : memref<2x64x32xbf16, #tpu.memory_space<vmem>>, vector<1x64x32xbf16>
      %273 = vector.shape_cast %272 : vector<1x64x32xbf16> to vector<64x32xbf16>
      %cst_87 = arith.constant dense<0.000000e+00> : vector<16x32xf32>
      %274 = tpu.matmul %270, %273, %cst_87 {dimension_numbers = #tpu.dot_dimension_numbers<[1], [0], [0], [1], [0, 0, 1, 1], [], []>} : vector<16x64xbf16>, vector<64x32xbf16>, vector<16x32xf32> -> vector<16x32xf32>
      %275 = arith.index_cast %arg24 : i32 to index
      %c0_88 = arith.constant 0 : index
      %c0_89 = arith.constant 0 : index
      %276 = vector.load %arg18[%275, %c0_88, %c0_89] : memref<2x1x32xf32, #tpu.memory_space<vmem>>, vector<1x1x32xf32>
      %277 = vector.shape_cast %276 : vector<1x1x32xf32> to vector<1x32xf32>
      %278 = vector.broadcast %277 : vector<1x32xf32> to vector<16x32xf32>
      %279 = arith.addf %274, %278 : vector<16x32xf32>
      %280 = arith.addf %223, %279 : vector<16x32xf32>
      %281 = arith.index_cast %arg24 : i32 to index
      %c0_90 = arith.constant 0 : index
      %c0_91 = arith.constant 0 : index
      %282 = vector.load %arg19[%281, %c0_90, %c0_91] : memref<2x1x32xf32, #tpu.memory_space<vmem>>, vector<1x1x32xf32>
      %283 = vector.shape_cast %282 : vector<1x1x32xf32> to vector<1x32xf32>
      %284 = arith.index_cast %arg24 : i32 to index
      %c0_92 = arith.constant 0 : index
      %c0_93 = arith.constant 0 : index
      %285 = vector.load %arg20[%284, %c0_92, %c0_93] : memref<2x1x32xf32, #tpu.memory_space<vmem>>, vector<1x1x32xf32>
      %286 = vector.shape_cast %285 : vector<1x1x32xf32> to vector<1x32xf32>
      %cst_94 = arith.constant dense<0.000000e+00> : vector<16xf32>
      %287 = vector.multi_reduction <add>, %280, %cst_94 [1] : vector<16x32xf32> to vector<16xf32>
      %288 = vector.shape_cast %287 : vector<16xf32> to vector<16x1xf32>
      %cst_95 = arith.constant 3.200000e+01 : f32
      %289 = vector.broadcast %cst_95 : f32 to vector<16x1xf32>
      %290 = arith.divf %288, %289 : vector<16x1xf32>
      %291 = vector.broadcast %290 : vector<16x1xf32> to vector<16x32xf32>
      %292 = arith.subf %280, %291 : vector<16x32xf32>
      %293 = vector.broadcast %290 : vector<16x1xf32> to vector<16x32xf32>
      %294 = arith.subf %280, %293 : vector<16x32xf32>
      %295 = arith.mulf %292, %294 : vector<16x32xf32>
      %cst_96 = arith.constant dense<0.000000e+00> : vector<16xf32>
      %296 = vector.multi_reduction <add>, %295, %cst_96 [1] : vector<16x32xf32> to vector<16xf32>
      %297 = vector.shape_cast %296 : vector<16xf32> to vector<16x1xf32>
      %cst_97 = arith.constant 3.200000e+01 : f32
      %298 = vector.broadcast %cst_97 : f32 to vector<16x1xf32>
      %299 = arith.divf %297, %298 : vector<16x1xf32>
      %300 = vector.broadcast %290 : vector<16x1xf32> to vector<16x32xf32>
      %301 = arith.subf %280, %300 : vector<16x32xf32>
      %cst_98 = arith.constant 9.99999974E-6 : f32
      %302 = vector.broadcast %cst_98 : f32 to vector<16x1xf32>
      %303 = arith.addf %299, %302 : vector<16x1xf32>
      %304 = math.rsqrt %303 : vector<16x1xf32>
      %305 = vector.broadcast %304 : vector<16x1xf32> to vector<16x32xf32>
      %306 = arith.mulf %301, %305 : vector<16x32xf32>
      %307 = vector.broadcast %283 : vector<1x32xf32> to vector<16x32xf32>
      %308 = arith.mulf %306, %307 : vector<16x32xf32>
      %309 = vector.broadcast %286 : vector<1x32xf32> to vector<16x32xf32>
      %310 = arith.addf %308, %309 : vector<16x32xf32>
      scf.yield %310 : vector<16x32xf32>
    }
    %c2_i32_9 = arith.constant 2 : i32
    %33 = arith.truncf %32 : vector<16x32xf32> to vector<16x32xbf16>
    %c0_10 = arith.constant 0 : index
    %c0_11 = arith.constant 0 : index
    %34 = vector.load %arg21[%c0_10, %c0_11] : memref<32x128xbf16, #tpu.memory_space<vmem>>, vector<32x128xbf16>
    %cst_12 = arith.constant dense<0.000000e+00> : vector<16x128xf32>
    %35 = tpu.matmul %33, %34, %cst_12 {dimension_numbers = #tpu.dot_dimension_numbers<[1], [0], [0], [1], [0, 0, 1, 1], [], []>} : vector<16x32xbf16>, vector<32x128xbf16>, vector<16x128xf32> -> vector<16x128xf32>
    %c0_13 = arith.constant 0 : index
    %c0_14 = arith.constant 0 : index
    %36 = vector.load %arg22[%c0_13, %c0_14] : memref<1x128xf32, #tpu.memory_space<vmem>>, vector<1x128xf32>
    %37 = vector.broadcast %36 : vector<1x128xf32> to vector<16x128xf32>
    %38 = arith.addf %35, %37 : vector<16x128xf32>
    %c0_15 = arith.constant 0 : index
    %c0_16 = arith.constant 0 : index
    %39 = vector.load %arg23[%c0_15, %c0_16] : memref<16x128xf32, #tpu.memory_space<vmem>>, vector<16x128xf32>
    tpu.vector_store %arg23[%c0_15, %c0_16], %38 {strides = array<i32>} : memref<16x128xf32, #tpu.memory_space<vmem>>, vector<16x128xf32>,
    return
  }
  func.func @transform_0(%arg0: i32) -> (i32, i32) {
    %c0_i32 = arith.constant 0 : i32
    %c0_i32_0 = arith.constant 0 : i32
    return %arg0, %c0_i32 : i32, i32
  }
  func.func @transform_1(%arg0: i32) -> (i32, i32) {
    %c0_i32 = arith.constant 0 : i32
    %c0_i32_0 = arith.constant 0 : i32
    return %arg0, %c0_i32 : i32, i32
  }
  func.func @transform_2(%arg0: i32) -> (i32, i32) {
    %c0_i32 = arith.constant 0 : i32
    %c0_i32_0 = arith.constant 0 : i32
    return %arg0, %c0_i32 : i32, i32
  }
  func.func @transform_3(%arg0: i32) -> (i32, i32) {
    %c0_i32 = arith.constant 0 : i32
    %c0_i32_0 = arith.constant 0 : i32
    %c0_i32_1 = arith.constant 0 : i32
    return %c0_i32, %c0_i32_0 : i32, i32
  }
  func.func @transform_4(%arg0: i32) -> (i32, i32) {
    %c0_i32 = arith.constant 0 : i32
    %c0_i32_0 = arith.constant 0 : i32
    %c0_i32_1 = arith.constant 0 : i32
    return %c0_i32, %c0_i32_0 : i32, i32
  }
  func.func @transform_5(%arg0: i32) -> (i32, i32, i32) {
    %c0_i32 = arith.constant 0 : i32
    %c0_i32_0 = arith.constant 0 : i32
    %c0_i32_1 = arith.constant 0 : i32
    %c0_i32_2 = arith.constant 0 : i32
    return %c0_i32, %c0_i32_0, %c0_i32_1 : i32, i32, i32
  }
  func.func @transform_6(%arg0: i32) -> (i32, i32, i32) {
    %c0_i32 = arith.constant 0 : i32
    %c0_i32_0 = arith.constant 0 : i32
    %c0_i32_1 = arith.constant 0 : i32
    %c0_i32_2 = arith.constant 0 : i32
    return %c0_i32, %c0_i32_0, %c0_i32_1 : i32, i32, i32
  }
  func.func @transform_7(%arg0: i32) -> (i32, i32, i32) {
    %c0_i32 = arith.constant 0 : i32
    %c0_i32_0 = arith.constant 0 : i32
    %c0_i32_1 = arith.constant 0 : i32
    %c0_i32_2 = arith.constant 0 : i32
    return %c0_i32, %c0_i32_0, %c0_i32_1 : i32, i32, i32
  }
  func.func @transform_8(%arg0: i32) -> (i32, i32, i32) {
    %c0_i32 = arith.constant 0 : i32
    %c0_i32_0 = arith.constant 0 : i32
    %c0_i32_1 = arith.constant 0 : i32
    %c0_i32_2 = arith.constant 0 : i32
    return %c0_i32, %c0_i32_0, %c0_i32_1 : i32, i32, i32
  }
  func.func @transform_9(%arg0: i32) -> (i32, i32, i32) {
    %c0_i32 = arith.constant 0 : i32
    %c0_i32_0 = arith.constant 0 : i32
    %c0_i32_1 = arith.constant 0 : i32
    %c0_i32_2 = arith.constant 0 : i32
    return %c0_i32, %c0_i32_0, %c0_i32_1 : i32, i32, i32
  }
  func.func @transform_10(%arg0: i32) -> (i32, i32, i32) {
    %c0_i32 = arith.constant 0 : i32
    %c0_i32_0 = arith.constant 0 : i32
    %c0_i32_1 = arith.constant 0 : i32
    %c0_i32_2 = arith.constant 0 : i32
    return %c0_i32, %c0_i32_0, %c0_i32_1 : i32, i32, i32
  }
  func.func @transform_11(%arg0: i32) -> (i32, i32, i32) {
    %c0_i32 = arith.constant 0 : i32
    %c0_i32_0 = arith.constant 0 : i32
    %c0_i32_1 = arith.constant 0 : i32
    %c0_i32_2 = arith.constant 0 : i32
    return %c0_i32, %c0_i32_0, %c0_i32_1 : i32, i32, i32
  }
  func.func @transform_12(%arg0: i32) -> (i32, i32, i32) {
    %c0_i32 = arith.constant 0 : i32
    %c0_i32_0 = arith.constant 0 : i32
    %c0_i32_1 = arith.constant 0 : i32
    %c0_i32_2 = arith.constant 0 : i32
    return %c0_i32, %c0_i32_0, %c0_i32_1 : i32, i32, i32
  }
  func.func @transform_13(%arg0: i32) -> (i32, i32, i32) {
    %c0_i32 = arith.constant 0 : i32
    %c0_i32_0 = arith.constant 0 : i32
    %c0_i32_1 = arith.constant 0 : i32
    %c0_i32_2 = arith.constant 0 : i32
    return %c0_i32, %c0_i32_0, %c0_i32_1 : i32, i32, i32
  }
  func.func @transform_14(%arg0: i32) -> (i32, i32, i32) {
    %c0_i32 = arith.constant 0 : i32
    %c0_i32_0 = arith.constant 0 : i32
    %c0_i32_1 = arith.constant 0 : i32
    %c0_i32_2 = arith.constant 0 : i32
    return %c0_i32, %c0_i32_0, %c0_i32_1 : i32, i32, i32
  }
  func.func @transform_15(%arg0: i32) -> (i32, i32, i32) {
    %c0_i32 = arith.constant 0 : i32
    %c0_i32_0 = arith.constant 0 : i32
    %c0_i32_1 = arith.constant 0 : i32
    %c0_i32_2 = arith.constant 0 : i32
    return %c0_i32, %c0_i32_0, %c0_i32_1 : i32, i32, i32
  }
  func.func @transform_16(%arg0: i32) -> (i32, i32, i32) {
    %c0_i32 = arith.constant 0 : i32
    %c0_i32_0 = arith.constant 0 : i32
    %c0_i32_1 = arith.constant 0 : i32
    %c0_i32_2 = arith.constant 0 : i32
    return %c0_i32, %c0_i32_0, %c0_i32_1 : i32, i32, i32
  }
  func.func @transform_17(%arg0: i32) -> (i32, i32, i32) {
    %c0_i32 = arith.constant 0 : i32
    %c0_i32_0 = arith.constant 0 : i32
    %c0_i32_1 = arith.constant 0 : i32
    %c0_i32_2 = arith.constant 0 : i32
    return %c0_i32, %c0_i32_0, %c0_i32_1 : i32, i32, i32
  }
  func.func @transform_18(%arg0: i32) -> (i32, i32, i32) {
    %c0_i32 = arith.constant 0 : i32
    %c0_i32_0 = arith.constant 0 : i32
    %c0_i32_1 = arith.constant 0 : i32
    %c0_i32_2 = arith.constant 0 : i32
    return %c0_i32, %c0_i32_0, %c0_i32_1 : i32, i32, i32
  }
  func.func @transform_19(%arg0: i32) -> (i32, i32, i32) {
    %c0_i32 = arith.constant 0 : i32
    %c0_i32_0 = arith.constant 0 : i32
    %c0_i32_1 = arith.constant 0 : i32
    %c0_i32_2 = arith.constant 0 : i32
    return %c0_i32, %c0_i32_0, %c0_i32_1 : i32, i32, i32
  }
  func.func @transform_20(%arg0: i32) -> (i32, i32) {
    %c0_i32 = arith.constant 0 : i32
    %c0_i32_0 = arith.constant 0 : i32
    %c0_i32_1 = arith.constant 0 : i32
    return %c0_i32, %c0_i32_0 : i32, i32
  }
  func.func @transform_21(%arg0: i32) -> (i32, i32) {
    %c0_i32 = arith.constant 0 : i32
    %c0_i32_0 = arith.constant 0 : i32
    %c0_i32_1 = arith.constant 0 : i32
    return %c0_i32, %c0_i32_0 : i32, i32
  }
  func.func @transform_22(%arg0: i32) -> (i32, i32) {
    %c0_i32 = arith.constant 0 : i32
    %c0_i32_0 = arith.constant 0 : i32
    return %arg0, %c0_i32 : i32, i32
  }
}

</mosaic_0001>

<llo_original>
// kernel: tpu_custom_call.1
$region0: #{tpu_custom_call.1}
  #allocation0 [shape = 'u32[]', space=smem, size = 0x4, offset = 0x4, fixed_abs, tag = 'smem constant byte address 0x4 - core index']
  #allocation1 [shape = 'u32[144,128]{1,0:T(1,128)}', space=vmem, size = 0x12000, scoped, tag = 'internal scratch']
  %s0 = inlined_call_operand.vmem [shape: s32[16,1], index: 0, kind: input, shape index: {}]
  %s1 = inlined_call_operand.vmem [shape: s32[16,1], index: 1, kind: input, shape index: {}]
  %s2 = inlined_call_operand.vmem [shape: s32[16,1], index: 2, kind: input, shape index: {}]
  %s3 = inlined_call_operand.vmem [shape: bf16[128,32], index: 3, kind: input, shape index: {}]
  %s4 = inlined_call_operand.vmem [shape: f32[8,32], index: 4, kind: input, shape index: {}]
  %s5 = inlined_call_operand.vmem [shape: bf16[2,32,96], index: 5, kind: input, shape index: {}]
  %s6 = inlined_call_operand.vmem [shape: f32[2,1,96], index: 6, kind: input, shape index: {}]
  %s7 = inlined_call_operand.vmem [shape: bf16[2,32,32], index: 7, kind: input, shape index: {}]
  %s8 = inlined_call_operand.vmem [shape: f32[2,1,32], index: 8, kind: input, shape index: {}]
  %s9 = inlined_call_operand.vmem [shape: f32[2,1,32], index: 9, kind: input, shape index: {}]
  %s10 = inlined_call_operand.vmem [shape: f32[2,1,32], index: 10, kind: input, shape index: {}]
  %s11 = inlined_call_operand.vmem [shape: f32[2,1,32], index: 11, kind: input, shape index: {}]
  %s12 = inlined_call_operand.vmem [shape: f32[2,1,32], index: 12, kind: input, shape index: {}]
  %s13 = inlined_call_operand.vmem [shape: f32[2,1,32], index: 13, kind: input, shape index: {}]
  %s14 = inlined_call_operand.vmem [shape: bf16[2,32,64], index: 14, kind: input, shape index: {}]
  %s15 = inlined_call_operand.vmem [shape: f32[2,1,64], index: 15, kind: input, shape index: {}]
  %s16 = inlined_call_operand.vmem [shape: bf16[2,64,32], index: 16, kind: input, shape index: {}]
  %s17 = inlined_call_operand.vmem [shape: f32[2,1,32], index: 17, kind: input, shape index: {}]
  %s18 = inlined_call_operand.vmem [shape: f32[2,1,32], index: 18, kind: input, shape index: {}]
  %s19 = inlined_call_operand.vmem [shape: f32[2,1,32], index: 19, kind: input, shape index: {}]
  %s20 = inlined_call_operand.vmem [shape: bf16[32,128], index: 20, kind: input, shape index: {}]
  %s21 = inlined_call_operand.vmem [shape: f32[1,128], index: 21, kind: input, shape index: {}]
  %s22 = inlined_call_operand.hbm [shape: f32[16,128], index: 22, kind: output, shape index: {}]
  %s23 = sld [smem:[#allocation0]]
  $region105: #{tpu_custom_call.1} parent=0
    _
  %s25 = ssub.s32 1, %s23
  %s26 = scalar_select 0, %s25, %s23
  $region1: #{tpu_custom_call.1} parent=0
    #allocation2 [shape = 'u8[8192]{0}', space=vmem, size = 0x2000, scoped, tag = 'output window, operand 0, single buffered']
    #allocation3 [shape = 's32[1]{0}', space=sflag, size = 0x4, scoped, tag = 'scoped memory for tpu_custom_call.1']
    %27 = vsyncpa [#allocation3], 0
    // Predicated region
    $region2: #{tpu_custom_call.1} parent=1 // pred_check
      _
    $region3: #{tpu_custom_call.1} parent=1 // pred_check_branch
      %29 = sbr.rel (0) target = $region5
    $region4: #{tpu_custom_call.1} parent=1 // pred_region
      _
    $region5: #{tpu_custom_call.1} parent=1 // pred_fallthru
      _
    // Predicated region
    $region6: #{tpu_custom_call.1} parent=1 // pred_check
      _
    $region7: #{tpu_custom_call.1} parent=1 // pred_check_branch
      %31 = sbr.rel (0) target = $region9
    $region8: #{tpu_custom_call.1} parent=1 // pred_region
      _
    $region9: #{tpu_custom_call.1} parent=1 // pred_fallthru
      _
    // Predicated region
    $region10: #{tpu_custom_call.1} parent=1 // pred_check
      _
    $region11: #{tpu_custom_call.1} parent=1 // pred_check_branch
      %33 = sbr.rel (0) target = $region13
    $region12: #{tpu_custom_call.1} parent=1 // pred_region
      _
    $region13: #{tpu_custom_call.1} parent=1 // pred_fallthru
      _
    // Predicated region
    $region14: #{tpu_custom_call.1} parent=1 // pred_check
      _
    $region15: #{tpu_custom_call.1} parent=1 // pred_check_branch
      %35 = sbr.rel (0) target = $region17
    $region16: #{tpu_custom_call.1} parent=1 // pred_region
      _
    $region17: #{tpu_custom_call.1} parent=1 // pred_fallthru
      _
    // Predicated region
    $region18: #{tpu_custom_call.1} parent=1 // pred_check
      _
    $region19: #{tpu_custom_call.1} parent=1 // pred_check_branch
      %37 = sbr.rel (0) target = $region21
    $region20: #{tpu_custom_call.1} parent=1 // pred_region
      _
    $region21: #{tpu_custom_call.1} parent=1 // pred_fallthru
      _
    // Predicated region
    $region22: #{tpu_custom_call.1} parent=1 // pred_check
      _
    $region23: #{tpu_custom_call.1} parent=1 // pred_check_branch
      %39 = sbr.rel (0) target = $region25
    $region24: #{tpu_custom_call.1} parent=1 // pred_region
      _
    $region25: #{tpu_custom_call.1} parent=1 // pred_fallthru
      _
    // Predicated region
    $region26: #{tpu_custom_call.1} parent=1 // pred_check
      _
    $region27: #{tpu_custom_call.1} parent=1 // pred_check_branch
      %41 = sbr.rel (0) target = $region29
    $region28: #{tpu_custom_call.1} parent=1 // pred_region
      _
    $region29: #{tpu_custom_call.1} parent=1 // pred_fallthru
      _
    // Predicated region
    $region30: #{tpu_custom_call.1} parent=1 // pred_check
      _
    $region31: #{tpu_custom_call.1} parent=1 // pred_check_branch
      %43 = sbr.rel (0) target = $region33
    $region32: #{tpu_custom_call.1} parent=1 // pred_region
      _
    $region33: #{tpu_custom_call.1} parent=1 // pred_fallthru
      _
    // Predicated region
    $region34: #{tpu_custom_call.1} parent=1 // pred_check
      _
    $region35: #{tpu_custom_call.1} parent=1 // pred_check_branch
      %45 = sbr.rel (0) target = $region37
    $region36: #{tpu_custom_call.1} parent=1 // pred_region
      _
    $region37: #{tpu_custom_call.1} parent=1 // pred_fallthru
      _
    // Predicated region
    $region38: #{tpu_custom_call.1} parent=1 // pred_check
      _
    $region39: #{tpu_custom_call.1} parent=1 // pred_check_branch
      %47 = sbr.rel (0) target = $region41
    $region40: #{tpu_custom_call.1} parent=1 // pred_region
      _
    $region41: #{tpu_custom_call.1} parent=1 // pred_fallthru
      _
    // Predicated region
    $region42: #{tpu_custom_call.1} parent=1 // pred_check
      _
    $region43: #{tpu_custom_call.1} parent=1 // pred_check_branch
      %49 = sbr.rel (0) target = $region45
    $region44: #{tpu_custom_call.1} parent=1 // pred_region
      _
    $region45: #{tpu_custom_call.1} parent=1 // pred_fallthru
      _
    // Predicated region
    $region46: #{tpu_custom_call.1} parent=1 // pred_check
      _
    $region47: #{tpu_custom_call.1} parent=1 // pred_check_branch
      %51 = sbr.rel (0) target = $region49
    $region48: #{tpu_custom_call.1} parent=1 // pred_region
      _
    $region49: #{tpu_custom_call.1} parent=1 // pred_fallthru
      _
    // Predicated region
    $region50: #{tpu_custom_call.1} parent=1 // pred_check
      _
    $region51: #{tpu_custom_call.1} parent=1 // pred_check_branch
      %53 = sbr.rel (0) target = $region53
    $region52: #{tpu_custom_call.1} parent=1 // pred_region
      _
    $region53: #{tpu_custom_call.1} parent=1 // pred_fallthru
      _
    // Predicated region
    $region54: #{tpu_custom_call.1} parent=1 // pred_check
      _
    $region55: #{tpu_custom_call.1} parent=1 // pred_check_branch
      %55 = sbr.rel (0) target = $region57
    $region56: #{tpu_custom_call.1} parent=1 // pred_region
      _
    $region57: #{tpu_custom_call.1} parent=1 // pred_fallthru
      _
    // Predicated region
    $region58: #{tpu_custom_call.1} parent=1 // pred_check
      _
    $region59: #{tpu_custom_call.1} parent=1 // pred_check_branch
      %57 = sbr.rel (0) target = $region61
    $region60: #{tpu_custom_call.1} parent=1 // pred_region
      _
    $region61: #{tpu_custom_call.1} parent=1 // pred_fallthru
      _
    // Predicated region
    $region62: #{tpu_custom_call.1} parent=1 // pred_check
      _
    $region63: #{tpu_custom_call.1} parent=1 // pred_check_branch
      %59 = sbr.rel (0) target = $region65
    $region64: #{tpu_custom_call.1} parent=1 // pred_region
      _
    $region65: #{tpu_custom_call.1} parent=1 // pred_fallthru
      _
    // Predicated region
    $region66: #{tpu_custom_call.1} parent=1 // pred_check
      _
    $region67: #{tpu_custom_call.1} parent=1 // pred_check_branch
      %61 = sbr.rel (0) target = $region69
    $region68: #{tpu_custom_call.1} parent=1 // pred_region
      _
    $region69: #{tpu_custom_call.1} parent=1 // pred_fallthru
      _
    // Predicated region
    $region70: #{tpu_custom_call.1} parent=1 // pred_check
      _
    $region71: #{tpu_custom_call.1} parent=1 // pred_check_branch
      %63 = sbr.rel (0) target = $region73
    $region72: #{tpu_custom_call.1} parent=1 // pred_region
      _
    $region73: #{tpu_custom_call.1} parent=1 // pred_fallthru
      _
    // Predicated region
    $region74: #{tpu_custom_call.1} parent=1 // pred_check
      _
    $region75: #{tpu_custom_call.1} parent=1 // pred_check_branch
      %65 = sbr.rel (0) target = $region77
    $region76: #{tpu_custom_call.1} parent=1 // pred_region
      _
    $region77: #{tpu_custom_call.1} parent=1 // pred_fallthru
      _
    // Predicated region
    $region78: #{tpu_custom_call.1} parent=1 // pred_check
      _
    $region79: #{tpu_custom_call.1} parent=1 // pred_check_branch
      %67 = sbr.rel (0) target = $region81
    $region80: #{tpu_custom_call.1} parent=1 // pred_region
      _
    $region81: #{tpu_custom_call.1} parent=1 // pred_fallthru
      _
    // Predicated region
    $region82: #{tpu_custom_call.1} parent=1 // pred_check
      _
    $region83: #{tpu_custom_call.1} parent=1 // pred_check_branch
      %69 = sbr.rel (0) target = $region85
    $region84: #{tpu_custom_call.1} parent=1 // pred_region
      _
    $region85: #{tpu_custom_call.1} parent=1 // pred_fallthru
      _
    // Predicated region
    $region86: #{tpu_custom_call.1} parent=1 // pred_check
      _
    $region87: #{tpu_custom_call.1} parent=1 // pred_check_branch
      %71 = sbr.rel (0) target = $region89
    $region88: #{tpu_custom_call.1} parent=1 // pred_region
      _
    $region89: #{tpu_custom_call.1} parent=1 // pred_fallthru
      _
    %v73 = vlaneseq
    %v74 = vand.u32 %v73, 127
    %v75 = vld [vmem:[%s0] sm:$0xff]
    %v76 = vld [vmem:[%s0 + $0x8] sm:$0xff]
    %77 = vset.pattern.permute.xlu0 0
    %78 = vperm.xlu0 %77, %v75
    %v79 = vpop.permute.xlu0 %78
    %80 = vset.pattern.permute.xlu0 0
    %81 = vperm.xlu0 %80, %v76
    %v82 = vpop.permute.xlu0 %81
    %vm83 = vcmp.eq.s32.totalorder %v79, %v74
    %vm84 = vcmp.eq.s32.totalorder %v82, %v74
    %v85 = vld [vmem:[%s1] sm:$0xff]
    %v86 = vld [vmem:[%s1 + $0x8] sm:$0xff]
    %v87 = vadd.s32 %v85, 16
    %v88 = vadd.s32 %v86, 16
    %89 = vset.pattern.permute.xlu0 0
    %90 = vperm.xlu0 %89, %v87
    %v91 = vpop.permute.xlu0 %90
    %92 = vset.pattern.permute.xlu0 0
    %93 = vperm.xlu0 %92, %v88
    %v94 = vpop.permute.xlu0 %93
    %vm95 = vcmp.eq.s32.totalorder %v91, %v74
    %vm96 = vcmp.eq.s32.totalorder %v94, %v74
    %vm97 = vmor %vm83, %vm95
    %vm98 = vmor %vm84, %vm96
    %v99 = vld [vmem:[%s2] sm:$0xff]
    %v100 = vld [vmem:[%s2 + $0x8] sm:$0xff]
    %v101 = vadd.s32 %v99, 28
    %v102 = vadd.s32 %v100, 28
    %103 = vset.pattern.permute.xlu0 0
    %104 = vperm.xlu0 %103, %v101
    %v105 = vpop.permute.xlu0 %104
    %106 = vset.pattern.permute.xlu0 0
    %107 = vperm.xlu0 %106, %v102
    %v108 = vpop.permute.xlu0 %107
    %vm109 = vcmp.eq.s32.totalorder %v105, %v74
    %vm110 = vcmp.eq.s32.totalorder %v108, %v74
    %vm111 = vmor %vm97, %vm109
    %vm112 = vmor %vm98, %vm110
    %v113 = vsel %vm111, 1, 0
    %v114 = vsel %vm112, 1, 0
    %v115 = vcvt.s32.f32 %v113
    %v116 = vcvt.s32.f32 %v114
    %v117 = vpack.c.bf16 %v116, %v115
    %v118 = vld [vmem:[%s3] sm:$0xf]
    %v119 = vld [vmem:[%s3 + $0x4] sm:$0xf]
    %v120 = vld [vmem:[%s3 + $0x8] sm:$0xf]
    %v121 = vld [vmem:[%s3 + $0xc] sm:$0xf]
    %v122 = vld [vmem:[%s3 + $0x10] sm:$0xf]
    %v123 = vld [vmem:[%s3 + $0x14] sm:$0xf]
    %v124 = vld [vmem:[%s3 + $0x18] sm:$0xf]
    %v125 = vld [vmem:[%s3 + $0x1c] sm:$0xf]
    %v126 = vld [vmem:[%s3 + $0x20] sm:$0xf]
    %v127 = vld [vmem:[%s3 + $0x24] sm:$0xf]
    %v128 = vld [vmem:[%s3 + $0x28] sm:$0xf]
    %v129 = vld [vmem:[%s3 + $0x2c] sm:$0xf]
    %v130 = vld [vmem:[%s3 + $0x30] sm:$0xf]
    %v131 = vld [vmem:[%s3 + $0x34] sm:$0xf]
    %v132 = vld [vmem:[%s3 + $0x38] sm:$0xf]
    %v133 = vld [vmem:[%s3 + $0x3c] sm:$0xf]
    %v150 = vunpack.c.l.b16 %v118
    %v151 = vunpack.c.l.b16 %v119
    %v152 = vunpack.c.l.b16 %v120
    %v153 = vunpack.c.l.b16 %v121
    %v154 = vunpack.c.l.b16 %v122
    %v155 = vunpack.c.l.b16 %v123
    %v156 = vunpack.c.l.b16 %v124
    %v157 = vunpack.c.l.b16 %v125
    %v158 = vunpack.c.l.b16 %v126
    %v159 = vunpack.c.l.b16 %v127
    %v160 = vunpack.c.l.b16 %v128
    %v161 = vunpack.c.l.b16 %v129
    %v162 = vunpack.c.l.b16 %v130
    %v163 = vunpack.c.l.b16 %v131
    %v164 = vunpack.c.l.b16 %v132
    %v165 = vunpack.c.l.b16 %v133
    %v166 = vpack.c.b16 %v151, %v150
    %v167 = vpack.c.b16 %v153, %v152
    %v168 = vpack.c.b16 %v155, %v154
    %v169 = vpack.c.b16 %v157, %v156
    %v170 = vpack.c.b16 %v159, %v158
    %v171 = vpack.c.b16 %v161, %v160
    %v172 = vpack.c.b16 %v163, %v162
    %v173 = vpack.c.b16 %v165, %v164
    %182 = vmatprep.subr.bf16.mxu0 0
    %183 = vmatpush1.bf16.msra.mxu0 %v166
    %184 = vmatprep.subr.bf16.mxu0 0
    %185 = vmatpush1.bf16.msra.mxu0 %v167
    %186 = vmatprep.subr.bf16.mxu0 0
    %187 = vmatpush1.bf16.msra.mxu0 %v168
    %188 = vmatprep.subr.bf16.mxu0 0
    %189 = vmatpush1.bf16.msra.mxu0 %v169
    %190 = vmatprep.subr.bf16.mxu0 0
    %191 = vmatpush1.bf16.msra.mxu0 %v170
    %192 = vmatprep.subr.bf16.mxu0 0
    %193 = vmatpush1.bf16.msra.mxu0 %v171
    %194 = vmatprep.subr.bf16.mxu0 0
    %195 = vmatpush1.bf16.msra.mxu0 %v172
    %196 = vmatprep.subr.bf16.mxu0 0
    %197 = vmatpush1.bf16.msra.mxu0 %v173
    %198 = vmatprep.subr.bf16.mxu0 0
    %199 = vmatpush1.bf16.msra.mxu0 0
    %200 = vmatprep.subr.bf16.mxu0 0
    %201 = vmatpush1.bf16.msra.mxu0 0
    %202 = vmatprep.subr.bf16.mxu0 0
    %203 = vmatpush1.bf16.msra.mxu0 0
    %204 = vmatprep.subr.bf16.mxu0 0
    %205 = vmatpush1.bf16.msra.mxu0 0
    %206 = vmatprep.subr.bf16.mxu0 0
    %207 = vmatpush1.bf16.msra.mxu0 0
    %208 = vmatprep.subr.bf16.mxu0 0
    %209 = vmatpush1.bf16.msra.mxu0 0
    %210 = vmatprep.subr.bf16.mxu0 0
    %211 = vmatpush1.bf16.msra.mxu0 0
    %212 = vmatprep.subr.bf16.mxu0 0
    %213 = vmatpush1.bf16.msra.mxu0 0
    %214 = vmatprep.mubr.bf16.mxu0 0
    %215 = vmatmul.mubr.bf16.gmra.mrb[0].mxu0 %v117
    %v216 = vpop.f32.mrb[0].mxu0
    %v217 = vadd.f32 0.0, %v216
    %v218 = vpop.f32.mrb[0].mxu0
    %v219 = vpop.f32.mrb[0].mxu0
    %v220 = vadd.f32 0.0, %v219
    %v221 = vpop.f32.mrb[0].mxu0
    %222 = vdwg.mxu0
    %v223 = vld [vmem:[%s4] sm:$0xff]
    %v224 = vadd.f32 %v217, %v223
    %v225 = vadd.f32 %v220, %v223
    %v226 = vlaneseq
    %v227 = vshrl.u32 %v226, 7
    %vm228 = vcmp.ge.s32.totalorder %v227, %v74
    loop: start=0, step=1, limit=2
    $region90: #{tpu_custom_call.1} parent=1 // loop_pre_header
      _
    $region91: #{tpu_custom_call.1} parent=1 // loop_header
      %s230 = sphi 0, %s234
      %p231 = scmp.ge.s32.totalorder %s230, 2
      %v235 = vphi %v224, %v1668
      %v236 = vphi %v225, %v1669
    $region92: #{tpu_custom_call.1} parent=1 // loop_header_branch
      %233 = sbr.rel (%p231) target = $region96
    $region93: #{tpu_custom_call.1} parent=1 // loop_body
      %v237 = vpack.c.bf16 %v236, %v235
      %s238 = smul.u32 %s230, 4
      %s239 = smul.addr %s238, 4
      %s240 = scalar_lea.vmem %s5, %s239
      %v241 = vld [vmem:[%s240] sm:$0xf]
      %v242 = vld [vmem:[%s240 + $0x4] sm:$0xf]
      %v243 = vld [vmem:[%s240 + $0x8] sm:$0xf]
      %v244 = vld [vmem:[%s240 + $0xc] sm:$0xf]
      %s245 = scalar_lea.vmem %s6, %s230
      %v246 = vld [vmem:[%s245] sm:$0x1]
      %v248 = vlaneseq
      %v249 = vshrl.u32 %v248, 7
      %v250 = vsub.s32 0, %v249
      %v251 = vrot.slane %v246, %v250
      %v257 = vunpack.c.l.b16 %v241
      %v258 = vunpack.c.l.b16 %v242
      %v259 = vunpack.c.l.b16 %v243
      %v260 = vunpack.c.l.b16 %v244
      %v261 = vpack.c.b16 %v258, %v257
      %v262 = vpack.c.b16 %v260, %v259
      %vm265 = vcmask 261120
      %v267 = vsel %vm265, %v237, 0
      %269 = vmatprep.subr.bf16.mxu0 0
      %270 = vmatpush1.bf16.msra.mxu0 %v261
      %271 = vmatprep.subr.bf16.mxu0 0
      %272 = vmatpush1.bf16.msra.mxu0 %v262
      %273 = vmatprep.subr.bf16.mxu0 0
      %274 = vmatpush1.bf16.msra.mxu0 0
      %275 = vmatprep.subr.bf16.mxu0 0
      %276 = vmatpush1.bf16.msra.mxu0 0
      %277 = vmatprep.subr.bf16.mxu0 0
      %278 = vmatpush1.bf16.msra.mxu0 0
      %279 = vmatprep.subr.bf16.mxu0 0
      %280 = vmatpush1.bf16.msra.mxu0 0
      %281 = vmatprep.subr.bf16.mxu0 0
      %282 = vmatpush1.bf16.msra.mxu0 0
      %283 = vmatprep.subr.bf16.mxu0 0
      %284 = vmatpush1.bf16.msra.mxu0 0
      %285 = vmatprep.subr.bf16.mxu0 0
      %286 = vmatpush1.bf16.msra.mxu0 0
      %287 = vmatprep.subr.bf16.mxu0 0
      %288 = vmatpush1.bf16.msra.mxu0 0
      %289 = vmatprep.subr.bf16.mxu0 0
      %290 = vmatpush1.bf16.msra.mxu0 0
      %291 = vmatprep.subr.bf16.mxu0 0
      %292 = vmatpush1.bf16.msra.mxu0 0
      %293 = vmatprep.subr.bf16.mxu0 0
      %294 = vmatpush1.bf16.msra.mxu0 0
      %295 = vmatprep.subr.bf16.mxu0 0
      %296 = vmatpush1.bf16.msra.mxu0 0
      %297 = vmatprep.subr.bf16.mxu0 0
      %298 = vmatpush1.bf16.msra.mxu0 0
      %299 = vmatprep.subr.bf16.mxu0 0
      %300 = vmatpush1.bf16.msra.mxu0 0
      %301 = vmatprep.mubr.bf16.mxu0 0
      %302 = vmatmul.mubr.bf16.gmra.mrb[0].mxu0 %v267
      %v303 = vpop.f32.mrb[0].mxu0
      %v304 = vadd.f32 %v251, %v303
      %v305 = vpop.f32.mrb[0].mxu0
      %v306 = vpop.f32.mrb[0].mxu0
      %v307 = vadd.f32 %v251, %v306
      %v308 = vpop.f32.mrb[0].mxu0
      %309 = vdwg.mxu0
      %v310 = vpack.c.bf16 %v307, %v304
      %v312 = vunpack.c.l.b16 %v310
      %v313 = vunpack.c.h.b16 %v310
      %v314 = vpack.c.b16 %v312, %v312
      %v315 = vpack.c.b16 %v313, %v313
      %316 = vrot.lane.b32.xlu0 %v314, 96
      %v317 = vpop.permute.xlu0 %316
      %vm318 = vcmask 64512
      %v320 = vsel %vm318, %v314, 0
      %v323 = vsel %vm318, %v317, 0
      %325 = vmatprep.subr.bf16.mxu0 0
      %326 = vmatpush1.bf16.xpose.msra.mxu0 %v323
      %327 = vmatprep.subr.bf16.mxu0 0
      %328 = vmatpush1.bf16.xpose.msra.mxu0 0
      %329 = vmatprep.subr.bf16.mxu0 0
      %330 = vmatpush1.bf16.xpose.msra.mxu0 0
      %331 = vmatprep.subr.bf16.mxu0 0
      %332 = vmatpush1.bf16.xpose.msra.mxu0 0
      %333 = vmatprep.subr.bf16.mxu0 0
      %334 = vmatpush1.bf16.xpose.msra.mxu0 0
      %335 = vmatprep.subr.bf16.mxu0 0
      %336 = vmatpush1.bf16.xpose.msra.mxu0 0
      %337 = vmatprep.subr.bf16.mxu0 0
      %338 = vmatpush1.bf16.xpose.msra.mxu0 0
      %339 = vmatprep.subr.bf16.mxu0 0
      %340 = vmatpush1.bf16.xpose.msra.mxu0 0
      %341 = vmatprep.subr.bf16.mxu0 0
      %342 = vmatpush1.bf16.xpose.msra.mxu0 0
      %343 = vmatprep.subr.bf16.mxu0 0
      %344 = vmatpush1.bf16.xpose.msra.mxu0 0
      %345 = vmatprep.subr.bf16.mxu0 0
      %346 = vmatpush1.bf16.xpose.msra.mxu0 0
      %347 = vmatprep.subr.bf16.mxu0 0
      %348 = vmatpush1.bf16.xpose.msra.mxu0 0
      %349 = vmatprep.subr.bf16.mxu0 0
      %350 = vmatpush1.bf16.xpose.msra.mxu0 0
      %351 = vmatprep.subr.bf16.mxu0 0
      %352 = vmatpush1.bf16.xpose.msra.mxu0 0
      %353 = vmatprep.subr.bf16.mxu0 0
      %354 = vmatpush1.bf16.xpose.msra.mxu0 0
      %355 = vmatprep.subr.bf16.mxu0 0
      %356 = vmatpush1.bf16.xpose.msra.mxu0 0
      %357 = vmatprep.mubr.bf16.mxu0 0
      %358 = vmatmul.mubr.bf16.gmra.mrb[0].mxu0 %v320
      %v359 = vpop.f32.mrb[0].mxu0
      %v360 = vadd.f32 0.0, %v359
      %v361 = vpop.f32.mrb[0].mxu0
      %v362 = vpop.f32.mrb[0].mxu0
      %v363 = vpop.f32.mrb[0].mxu0
      %364 = vdwg.mxu0
      %365 = vrot.lane.b32.xlu0 %v315, 96
      %v366 = vpop.permute.xlu0 %365
      %v368 = vsel %vm318, %v315, 0
      %v371 = vsel %vm318, %v366, 0
      %373 = vmatprep.subr.bf16.mxu0 0
      %374 = vmatpush1.bf16.xpose.msra.mxu0 %v371
      %375 = vmatprep.subr.bf16.mxu0 0
      %376 = vmatpush1.bf16.xpose.msra.mxu0 0
      %377 = vmatprep.subr.bf16.mxu0 0
      %378 = vmatpush1.bf16.xpose.msra.mxu0 0
      %379 = vmatprep.subr.bf16.mxu0 0
      %380 = vmatpush1.bf16.xpose.msra.mxu0 0
      %381 = vmatprep.subr.bf16.mxu0 0
      %382 = vmatpush1.bf16.xpose.msra.mxu0 0
      %383 = vmatprep.subr.bf16.mxu0 0
      %384 = vmatpush1.bf16.xpose.msra.mxu0 0
      %385 = vmatprep.subr.bf16.mxu0 0
      %386 = vmatpush1.bf16.xpose.msra.mxu0 0
      %387 = vmatprep.subr.bf16.mxu0 0
      %388 = vmatpush1.bf16.xpose.msra.mxu0 0
      %389 = vmatprep.subr.bf16.mxu0 0
      %390 = vmatpush1.bf16.xpose.msra.mxu0 0
      %391 = vmatprep.subr.bf16.mxu0 0
      %392 = vmatpush1.bf16.xpose.msra.mxu0 0
      %393 = vmatprep.subr.bf16.mxu0 0
      %394 = vmatpush1.bf16.xpose.msra.mxu0 0
      %395 = vmatprep.subr.bf16.mxu0 0
      %396 = vmatpush1.bf16.xpose.msra.mxu0 0
      %397 = vmatprep.subr.bf16.mxu0 0
      %398 = vmatpush1.bf16.xpose.msra.mxu0 0
      %399 = vmatprep.subr.bf16.mxu0 0
      %400 = vmatpush1.bf16.xpose.msra.mxu0 0
      %401 = vmatprep.subr.bf16.mxu0 0
      %402 = vmatpush1.bf16.xpose.msra.mxu0 0
      %403 = vmatprep.subr.bf16.mxu0 0
      %404 = vmatpush1.bf16.xpose.msra.mxu0 0
      %405 = vmatprep.mubr.bf16.mxu0 0
      %406 = vmatmul.mubr.bf16.gmra.mrb[0].mxu0 %v368
      %v407 = vpop.f32.mrb[0].mxu0
      %v408 = vadd.f32 0.0, %v407
      %v409 = vpop.f32.mrb[0].mxu0
      %v410 = vpop.f32.mrb[0].mxu0
      %v411 = vpop.f32.mrb[0].mxu0
      %412 = vdwg.mxu0
      %v413 = vsel %vm228, 1, 0
      %vm414 = vcmp.eq.s32.totalorder %v413, 1
      %v415 = vsel %vm414, %v360, -1e+30
      %v416 = vsel %vm414, %v408, -1e+30
      %v417 = vsel %vm318, %v415, -inf
      %418 = vmax.xlane.f32.xlu0 %v417
      %v419 = vpop.xlane.xlu0 %418
      %v420 = vsel %vm318, %v416, -inf
      %421 = vmax.xlane.f32.xlu0 %v420
      %v422 = vpop.xlane.xlu0 %421
      %v423 = vsub.f32 %v415, %v419
      %v424 = vsub.f32 %v416, %v422
      %v425 = vmul.f32 %v423, 1.442695
      %v426 = vpow.pop %v425
      %v427 = vmul.f32 %v424, 1.442695
      %v428 = vpow.pop %v427
      %v429 = vsel %vm318, %v426, 0.0
      %430 = vadd.xlane.f32.xlu0 %v429
      %v431 = vpop.xlane.xlu0 %430
      %v432 = vsel %vm318, %v428, 0.0
      %433 = vadd.xlane.f32.xlu0 %v432
      %v434 = vpop.xlane.xlu0 %433
      %v435 = vrcp.pop %v431
      %v436 = vrcp.pop %v434
      %v437 = vmul.f32 %v426, %v435
      %v438 = vmul.f32 %v428, %v436
      %v439 = vpack.c.bf16 %v437, %v437
      %v440 = vpack.c.bf16 %v438, %v438
      %441 = vrot.lane.b32.xlu0 %v314, 64
      %v442 = vpop.permute.xlu0 %441
      %v444 = vsel %vm318, %v439, 0
      %vm446 = vcmask 1043456
      %v448 = vsel %vm446, %v442, 0
      %450 = vmatprep.subr.bf16.mxu0 0
      %451 = vmatpush1.bf16.msra.mxu0 %v448
      %452 = vmatprep.subr.bf16.mxu0 0
      %453 = vmatpush1.bf16.msra.mxu0 0
      %454 = vmatprep.subr.bf16.mxu0 0
      %455 = vmatpush1.bf16.msra.mxu0 0
      %456 = vmatprep.subr.bf16.mxu0 0
      %457 = vmatpush1.bf16.msra.mxu0 0
      %458 = vmatprep.subr.bf16.mxu0 0
      %459 = vmatpush1.bf16.msra.mxu0 0
      %460 = vmatprep.subr.bf16.mxu0 0
      %461 = vmatpush1.bf16.msra.mxu0 0
      %462 = vmatprep.subr.bf16.mxu0 0
      %463 = vmatpush1.bf16.msra.mxu0 0
      %464 = vmatprep.subr.bf16.mxu0 0
      %465 = vmatpush1.bf16.msra.mxu0 0
      %466 = vmatprep.subr.bf16.mxu0 0
      %467 = vmatpush1.bf16.msra.mxu0 0
      %468 = vmatprep.subr.bf16.mxu0 0
      %469 = vmatpush1.bf16.msra.mxu0 0
      %470 = vmatprep.subr.bf16.mxu0 0
      %471 = vmatpush1.bf16.msra.mxu0 0
      %472 = vmatprep.subr.bf16.mxu0 0
      %473 = vmatpush1.bf16.msra.mxu0 0
      %474 = vmatprep.subr.bf16.mxu0 0
      %475 = vmatpush1.bf16.msra.mxu0 0
      %476 = vmatprep.subr.bf16.mxu0 0
      %477 = vmatpush1.bf16.msra.mxu0 0
      %478 = vmatprep.subr.bf16.mxu0 0
      %479 = vmatpush1.bf16.msra.mxu0 0
      %480 = vmatprep.subr.bf16.mxu0 0
      %481 = vmatpush1.bf16.msra.mxu0 0
      %482 = vmatprep.mubr.bf16.mxu0 0
      %483 = vmatmul.mubr.bf16.gmra.mrb[0].mxu0 %v444
      %v484 = vpop.f32.mrb[0].mxu0
      %v485 = vadd.f32 0.0, %v484
      %v486 = vpop.f32.mrb[0].mxu0
      %v487 = vpop.f32.mrb[0].mxu0
      %v488 = vpop.f32.mrb[0].mxu0
      %489 = vdwg.mxu0
      %490 = vrot.lane.b32.xlu0 %v315, 64
      %v491 = vpop.permute.xlu0 %490
      %v493 = vsel %vm318, %v440, 0
      %v496 = vsel %vm446, %v491, 0
      %498 = vmatprep.subr.bf16.mxu0 0
      %499 = vmatpush1.bf16.msra.mxu0 %v496
      %500 = vmatprep.subr.bf16.mxu0 0
      %501 = vmatpush1.bf16.msra.mxu0 0
      %502 = vmatprep.subr.bf16.mxu0 0
      %503 = vmatpush1.bf16.msra.mxu0 0
      %504 = vmatprep.subr.bf16.mxu0 0
      %505 = vmatpush1.bf16.msra.mxu0 0
      %506 = vmatprep.subr.bf16.mxu0 0
      %507 = vmatpush1.bf16.msra.mxu0 0
      %508 = vmatprep.subr.bf16.mxu0 0
      %509 = vmatpush1.bf16.msra.mxu0 0
      %510 = vmatprep.subr.bf16.mxu0 0
      %511 = vmatpush1.bf16.msra.mxu0 0
      %512 = vmatprep.subr.bf16.mxu0 0
      %513 = vmatpush1.bf16.msra.mxu0 0
      %514 = vmatprep.subr.bf16.mxu0 0
      %515 = vmatpush1.bf16.msra.mxu0 0
      %516 = vmatprep.subr.bf16.mxu0 0
      %517 = vmatpush1.bf16.msra.mxu0 0
      %518 = vmatprep.subr.bf16.mxu0 0
      %519 = vmatpush1.bf16.msra.mxu0 0
      %520 = vmatprep.subr.bf16.mxu0 0
      %521 = vmatpush1.bf16.msra.mxu0 0
      %522 = vmatprep.subr.bf16.mxu0 0
      %523 = vmatpush1.bf16.msra.mxu0 0
      %524 = vmatprep.subr.bf16.mxu0 0
      %525 = vmatpush1.bf16.msra.mxu0 0
      %526 = vmatprep.subr.bf16.mxu0 0
      %527 = vmatpush1.bf16.msra.mxu0 0
      %528 = vmatprep.subr.bf16.mxu0 0
      %529 = vmatpush1.bf16.msra.mxu0 0
      %530 = vmatprep.mubr.bf16.mxu0 0
      %531 = vmatmul.mubr.bf16.gmra.mrb[0].mxu0 %v493
      %v532 = vpop.f32.mrb[0].mxu0
      %v533 = vadd.f32 0.0, %v532
      %v534 = vpop.f32.mrb[0].mxu0
      %v535 = vpop.f32.mrb[0].mxu0
      %v536 = vpop.f32.mrb[0].mxu0
      %537 = vdwg.mxu0
      %538 = vrot.lane.b32.xlu0 %v314, 120
      %v539 = vpop.permute.xlu0 %538
      %540 = vrot.lane.b32.xlu0 %v314, 88
      %v541 = vpop.permute.xlu0 %540
      %v543 = vsel %vm318, %v539, 0
      %v546 = vsel %vm318, %v541, 0
      %548 = vmatprep.subr.bf16.mxu0 0
      %549 = vmatpush1.bf16.xpose.msra.mxu0 %v546
      %550 = vmatprep.subr.bf16.mxu0 0
      %551 = vmatpush1.bf16.xpose.msra.mxu0 0
      %552 = vmatprep.subr.bf16.mxu0 0
      %553 = vmatpush1.bf16.xpose.msra.mxu0 0
      %554 = vmatprep.subr.bf16.mxu0 0
      %555 = vmatpush1.bf16.xpose.msra.mxu0 0
      %556 = vmatprep.subr.bf16.mxu0 0
      %557 = vmatpush1.bf16.xpose.msra.mxu0 0
      %558 = vmatprep.subr.bf16.mxu0 0
      %559 = vmatpush1.bf16.xpose.msra.mxu0 0
      %560 = vmatprep.subr.bf16.mxu0 0
      %561 = vmatpush1.bf16.xpose.msra.mxu0 0
      %562 = vmatprep.subr.bf16.mxu0 0
      %563 = vmatpush1.bf16.xpose.msra.mxu0 0
      %564 = vmatprep.subr.bf16.mxu0 0
      %565 = vmatpush1.bf16.xpose.msra.mxu0 0
      %566 = vmatprep.subr.bf16.mxu0 0
      %567 = vmatpush1.bf16.xpose.msra.mxu0 0
      %568 = vmatprep.subr.bf16.mxu0 0
      %569 = vmatpush1.bf16.xpose.msra.mxu0 0
      %570 = vmatprep.subr.bf16.mxu0 0
      %571 = vmatpush1.bf16.xpose.msra.mxu0 0
      %572 = vmatprep.subr.bf16.mxu0 0
      %573 = vmatpush1.bf16.xpose.msra.mxu0 0
      %574 = vmatprep.subr.bf16.mxu0 0
      %575 = vmatpush1.bf16.xpose.msra.mxu0 0
      %576 = vmatprep.subr.bf16.mxu0 0
      %577 = vmatpush1.bf16.xpose.msra.mxu0 0
      %578 = vmatprep.subr.bf16.mxu0 0
      %579 = vmatpush1.bf16.xpose.msra.mxu0 0
      %580 = vmatprep.mubr.bf16.mxu0 0
      %581 = vmatmul.mubr.bf16.gmra.mrb[0].mxu0 %v543
      %v582 = vpop.f32.mrb[0].mxu0
      %v583 = vadd.f32 0.0, %v582
      %v584 = vpop.f32.mrb[0].mxu0
      %v585 = vpop.f32.mrb[0].mxu0
      %v586 = vpop.f32.mrb[0].mxu0
      %587 = vdwg.mxu0
      %588 = vrot.lane.b32.xlu0 %v315, 120
      %v589 = vpop.permute.xlu0 %588
      %590 = vrot.lane.b32.xlu0 %v315, 88
      %v591 = vpop.permute.xlu0 %590
      %v593 = vsel %vm318, %v589, 0
      %v596 = vsel %vm318, %v591, 0
      %598 = vmatprep.subr.bf16.mxu0 0
      %599 = vmatpush1.bf16.xpose.msra.mxu0 %v596
      %600 = vmatprep.subr.bf16.mxu0 0
      %601 = vmatpush1.bf16.xpose.msra.mxu0 0
      %602 = vmatprep.subr.bf16.mxu0 0
      %603 = vmatpush1.bf16.xpose.msra.mxu0 0
      %604 = vmatprep.subr.bf16.mxu0 0
      %605 = vmatpush1.bf16.xpose.msra.mxu0 0
      %606 = vmatprep.subr.bf16.mxu0 0
      %607 = vmatpush1.bf16.xpose.msra.mxu0 0
      %608 = vmatprep.subr.bf16.mxu0 0
      %609 = vmatpush1.bf16.xpose.msra.mxu0 0
      %610 = vmatprep.subr.bf16.mxu0 0
      %611 = vmatpush1.bf16.xpose.msra.mxu0 0
      %612 = vmatprep.subr.bf16.mxu0 0
      %613 = vmatpush1.bf16.xpose.msra.mxu0 0
      %614 = vmatprep.subr.bf16.mxu0 0
      %615 = vmatpush1.bf16.xpose.msra.mxu0 0
      %616 = vmatprep.subr.bf16.mxu0 0
      %617 = vmatpush1.bf16.xpose.msra.mxu0 0
      %618 = vmatprep.subr.bf16.mxu0 0
      %619 = vmatpush1.bf16.xpose.msra.mxu0 0
      %620 = vmatprep.subr.bf16.mxu0 0
      %621 = vmatpush1.bf16.xpose.msra.mxu0 0
      %622 = vmatprep.subr.bf16.mxu0 0
      %623 = vmatpush1.bf16.xpose.msra.mxu0 0
      %624 = vmatprep.subr.bf16.mxu0 0
      %625 = vmatpush1.bf16.xpose.msra.mxu0 0
      %626 = vmatprep.subr.bf16.mxu0 0
      %627 = vmatpush1.bf16.xpose.msra.mxu0 0
      %628 = vmatprep.subr.bf16.mxu0 0
      %629 = vmatpush1.bf16.xpose.msra.mxu0 0
      %630 = vmatprep.mubr.bf16.mxu0 0
      %631 = vmatmul.mubr.bf16.gmra.mrb[0].mxu0 %v593
      %v632 = vpop.f32.mrb[0].mxu0
      %v633 = vadd.f32 0.0, %v632
      %v634 = vpop.f32.mrb[0].mxu0
      %v635 = vpop.f32.mrb[0].mxu0
      %v636 = vpop.f32.mrb[0].mxu0
      %637 = vdwg.mxu0
      %v638 = vsel %vm414, %v583, -1e+30
      %v639 = vsel %vm414, %v633, -1e+30
      %v640 = vsel %vm318, %v638, -inf
      %641 = vmax.xlane.f32.xlu0 %v640
      %v642 = vpop.xlane.xlu0 %641
      %v643 = vsel %vm318, %v639, -inf
      %644 = vmax.xlane.f32.xlu0 %v643
      %v645 = vpop.xlane.xlu0 %644
      %v646 = vsub.f32 %v638, %v642
      %v647 = vsub.f32 %v639, %v645
      %v648 = vmul.f32 %v646, 1.442695
      %v649 = vpow.pop %v648
      %v650 = vmul.f32 %v647, 1.442695
      %v651 = vpow.pop %v650
      %v652 = vsel %vm318, %v649, 0.0
      %653 = vadd.xlane.f32.xlu0 %v652
      %v654 = vpop.xlane.xlu0 %653
      %v655 = vsel %vm318, %v651, 0.0
      %656 = vadd.xlane.f32.xlu0 %v655
      %v657 = vpop.xlane.xlu0 %656
      %v658 = vrcp.pop %v654
      %v659 = vrcp.pop %v657
      %v660 = vmul.f32 %v649, %v658
      %v661 = vmul.f32 %v651, %v659
      %v662 = vpack.c.bf16 %v660, %v660
      %v663 = vpack.c.bf16 %v661, %v661
      %664 = vrot.lane.b32.xlu0 %v314, 56
      %v665 = vpop.permute.xlu0 %664
      %v667 = vsel %vm318, %v662, 0
      %v670 = vsel %vm446, %v665, 0
      %672 = vmatprep.subr.bf16.mxu0 0
      %673 = vmatpush1.bf16.msra.mxu0 %v670
      %674 = vmatprep.subr.bf16.mxu0 0
      %675 = vmatpush1.bf16.msra.mxu0 0
      %676 = vmatprep.subr.bf16.mxu0 0
      %677 = vmatpush1.bf16.msra.mxu0 0
      %678 = vmatprep.subr.bf16.mxu0 0
      %679 = vmatpush1.bf16.msra.mxu0 0
      %680 = vmatprep.subr.bf16.mxu0 0
      %681 = vmatpush1.bf16.msra.mxu0 0
      %682 = vmatprep.subr.bf16.mxu0 0
      %683 = vmatpush1.bf16.msra.mxu0 0
      %684 = vmatprep.subr.bf16.mxu0 0
      %685 = vmatpush1.bf16.msra.mxu0 0
      %686 = vmatprep.subr.bf16.mxu0 0
      %687 = vmatpush1.bf16.msra.mxu0 0
      %688 = vmatprep.subr.bf16.mxu0 0
      %689 = vmatpush1.bf16.msra.mxu0 0
      %690 = vmatprep.subr.bf16.mxu0 0
      %691 = vmatpush1.bf16.msra.mxu0 0
      %692 = vmatprep.subr.bf16.mxu0 0
      %693 = vmatpush1.bf16.msra.mxu0 0
      %694 = vmatprep.subr.bf16.mxu0 0
      %695 = vmatpush1.bf16.msra.mxu0 0
      %696 = vmatprep.subr.bf16.mxu0 0
      %697 = vmatpush1.bf16.msra.mxu0 0
      %698 = vmatprep.subr.bf16.mxu0 0
      %699 = vmatpush1.bf16.msra.mxu0 0
      %700 = vmatprep.subr.bf16.mxu0 0
      %701 = vmatpush1.bf16.msra.mxu0 0
      %702 = vmatprep.subr.bf16.mxu0 0
      %703 = vmatpush1.bf16.msra.mxu0 0
      %704 = vmatprep.mubr.bf16.mxu0 0
      %705 = vmatmul.mubr.bf16.gmra.mrb[0].mxu0 %v667
      %v706 = vpop.f32.mrb[0].mxu0
      %v707 = vadd.f32 0.0, %v706
      %v708 = vpop.f32.mrb[0].mxu0
      %v709 = vpop.f32.mrb[0].mxu0
      %v710 = vpop.f32.mrb[0].mxu0
      %711 = vdwg.mxu0
      %712 = vrot.lane.b32.xlu0 %v315, 56
      %v713 = vpop.permute.xlu0 %712
      %v715 = vsel %vm318, %v663, 0
      %v718 = vsel %vm446, %v713, 0
      %720 = vmatprep.subr.bf16.mxu0 0
      %721 = vmatpush1.bf16.msra.mxu0 %v718
      %722 = vmatprep.subr.bf16.mxu0 0
      %723 = vmatpush1.bf16.msra.mxu0 0
      %724 = vmatprep.subr.bf16.mxu0 0
      %725 = vmatpush1.bf16.msra.mxu0 0
      %726 = vmatprep.subr.bf16.mxu0 0
      %727 = vmatpush1.bf16.msra.mxu0 0
      %728 = vmatprep.subr.bf16.mxu0 0
      %729 = vmatpush1.bf16.msra.mxu0 0
      %730 = vmatprep.subr.bf16.mxu0 0
      %731 = vmatpush1.bf16.msra.mxu0 0
      %732 = vmatprep.subr.bf16.mxu0 0
      %733 = vmatpush1.bf16.msra.mxu0 0
      %734 = vmatprep.subr.bf16.mxu0 0
      %735 = vmatpush1.bf16.msra.mxu0 0
      %736 = vmatprep.subr.bf16.mxu0 0
      %737 = vmatpush1.bf16.msra.mxu0 0
      %738 = vmatprep.subr.bf16.mxu0 0
      %739 = vmatpush1.bf16.msra.mxu0 0
      %740 = vmatprep.subr.bf16.mxu0 0
      %741 = vmatpush1.bf16.msra.mxu0 0
      %742 = vmatprep.subr.bf16.mxu0 0
      %743 = vmatpush1.bf16.msra.mxu0 0
      %744 = vmatprep.subr.bf16.mxu0 0
      %745 = vmatpush1.bf16.msra.mxu0 0
      %746 = vmatprep.subr.bf16.mxu0 0
      %747 = vmatpush1.bf16.msra.mxu0 0
      %748 = vmatprep.subr.bf16.mxu0 0
      %749 = vmatpush1.bf16.msra.mxu0 0
      %750 = vmatprep.subr.bf16.mxu0 0
      %751 = vmatpush1.bf16.msra.mxu0 0
      %752 = vmatprep.mubr.bf16.mxu0 0
      %753 = vmatmul.mubr.bf16.gmra.mrb[0].mxu0 %v715
      %v754 = vpop.f32.mrb[0].mxu0
      %v755 = vadd.f32 0.0, %v754
      %v756 = vpop.f32.mrb[0].mxu0
      %v757 = vpop.f32.mrb[0].mxu0
      %v758 = vpop.f32.mrb[0].mxu0
      %759 = vdwg.mxu0
      %760 = vrot.lane.b32.xlu0 %v314, 112
      %v761 = vpop.permute.xlu0 %760
      %762 = vrot.lane.b32.xlu0 %v314, 80
      %v763 = vpop.permute.xlu0 %762
      %v765 = vsel %vm318, %v761, 0
      %v768 = vsel %vm318, %v763, 0
      %770 = vmatprep.subr.bf16.mxu0 0
      %771 = vmatpush1.bf16.xpose.msra.mxu0 %v768
      %772 = vmatprep.subr.bf16.mxu0 0
      %773 = vmatpush1.bf16.xpose.msra.mxu0 0
      %774 = vmatprep.subr.bf16.mxu0 0
      %775 = vmatpush1.bf16.xpose.msra.mxu0 0
      %776 = vmatprep.subr.bf16.mxu0 0
      %777 = vmatpush1.bf16.xpose.msra.mxu0 0
      %778 = vmatprep.subr.bf16.mxu0 0
      %779 = vmatpush1.bf16.xpose.msra.mxu0 0
      %780 = vmatprep.subr.bf16.mxu0 0
      %781 = vmatpush1.bf16.xpose.msra.mxu0 0
      %782 = vmatprep.subr.bf16.mxu0 0
      %783 = vmatpush1.bf16.xpose.msra.mxu0 0
      %784 = vmatprep.subr.bf16.mxu0 0
      %785 = vmatpush1.bf16.xpose.msra.mxu0 0
      %786 = vmatprep.subr.bf16.mxu0 0
      %787 = vmatpush1.bf16.xpose.msra.mxu0 0
      %788 = vmatprep.subr.bf16.mxu0 0
      %789 = vmatpush1.bf16.xpose.msra.mxu0 0
      %790 = vmatprep.subr.bf16.mxu0 0
      %791 = vmatpush1.bf16.xpose.msra.mxu0 0
      %792 = vmatprep.subr.bf16.mxu0 0
      %793 = vmatpush1.bf16.xpose.msra.mxu0 0
      %794 = vmatprep.subr.bf16.mxu0 0
      %795 = vmatpush1.bf16.xpose.msra.mxu0 0
      %796 = vmatprep.subr.bf16.mxu0 0
      %797 = vmatpush1.bf16.xpose.msra.mxu0 0
      %798 = vmatprep.subr.bf16.mxu0 0
      %799 = vmatpush1.bf16.xpose.msra.mxu0 0
      %800 = vmatprep.subr.bf16.mxu0 0
      %801 = vmatpush1.bf16.xpose.msra.mxu0 0
      %802 = vmatprep.mubr.bf16.mxu0 0
      %803 = vmatmul.mubr.bf16.gmra.mrb[0].mxu0 %v765
      %v804 = vpop.f32.mrb[0].mxu0
      %v805 = vadd.f32 0.0, %v804
      %v806 = vpop.f32.mrb[0].mxu0
      %v807 = vpop.f32.mrb[0].mxu0
      %v808 = vpop.f32.mrb[0].mxu0
      %809 = vdwg.mxu0
      %810 = vrot.lane.b32.xlu0 %v315, 112
      %v811 = vpop.permute.xlu0 %810
      %812 = vrot.lane.b32.xlu0 %v315, 80
      %v813 = vpop.permute.xlu0 %812
      %v815 = vsel %vm318, %v811, 0
      %v818 = vsel %vm318, %v813, 0
      %820 = vmatprep.subr.bf16.mxu0 0
      %821 = vmatpush1.bf16.xpose.msra.mxu0 %v818
      %822 = vmatprep.subr.bf16.mxu0 0
      %823 = vmatpush1.bf16.xpose.msra.mxu0 0
      %824 = vmatprep.subr.bf16.mxu0 0
      %825 = vmatpush1.bf16.xpose.msra.mxu0 0
      %826 = vmatprep.subr.bf16.mxu0 0
      %827 = vmatpush1.bf16.xpose.msra.mxu0 0
      %828 = vmatprep.subr.bf16.mxu0 0
      %829 = vmatpush1.bf16.xpose.msra.mxu0 0
      %830 = vmatprep.subr.bf16.mxu0 0
      %831 = vmatpush1.bf16.xpose.msra.mxu0 0
      %832 = vmatprep.subr.bf16.mxu0 0
      %833 = vmatpush1.bf16.xpose.msra.mxu0 0
      %834 = vmatprep.subr.bf16.mxu0 0
      %835 = vmatpush1.bf16.xpose.msra.mxu0 0
      %836 = vmatprep.subr.bf16.mxu0 0
      %837 = vmatpush1.bf16.xpose.msra.mxu0 0
      %838 = vmatprep.subr.bf16.mxu0 0
      %839 = vmatpush1.bf16.xpose.msra.mxu0 0
      %840 = vmatprep.subr.bf16.mxu0 0
      %841 = vmatpush1.bf16.xpose.msra.mxu0 0
      %842 = vmatprep.subr.bf16.mxu0 0
      %843 = vmatpush1.bf16.xpose.msra.mxu0 0
      %844 = vmatprep.subr.bf16.mxu0 0
      %845 = vmatpush1.bf16.xpose.msra.mxu0 0
      %846 = vmatprep.subr.bf16.mxu0 0
      %847 = vmatpush1.bf16.xpose.msra.mxu0 0
      %848 = vmatprep.subr.bf16.mxu0 0
      %849 = vmatpush1.bf16.xpose.msra.mxu0 0
      %850 = vmatprep.subr.bf16.mxu0 0
      %851 = vmatpush1.bf16.xpose.msra.mxu0 0
      %852 = vmatprep.mubr.bf16.mxu0 0
      %853 = vmatmul.mubr.bf16.gmra.mrb[0].mxu0 %v815
      %v854 = vpop.f32.mrb[0].mxu0
      %v855 = vadd.f32 0.0, %v854
      %v856 = vpop.f32.mrb[0].mxu0
      %v857 = vpop.f32.mrb[0].mxu0
      %v858 = vpop.f32.mrb[0].mxu0
      %859 = vdwg.mxu0
      %v860 = vsel %vm414, %v805, -1e+30
      %v861 = vsel %vm414, %v855, -1e+30
      %v862 = vsel %vm318, %v860, -inf
      %863 = vmax.xlane.f32.xlu0 %v862
      %v864 = vpop.xlane.xlu0 %863
      %v865 = vsel %vm318, %v861, -inf
      %866 = vmax.xlane.f32.xlu0 %v865
      %v867 = vpop.xlane.xlu0 %866
      %v868 = vsub.f32 %v860, %v864
      %v869 = vsub.f32 %v861, %v867
      %v870 = vmul.f32 %v868, 1.442695
      %v871 = vpow.pop %v870
      %v872 = vmul.f32 %v869, 1.442695
      %v873 = vpow.pop %v872
      %v874 = vsel %vm318, %v871, 0.0
      %875 = vadd.xlane.f32.xlu0 %v874
      %v876 = vpop.xlane.xlu0 %875
      %v877 = vsel %vm318, %v873, 0.0
      %878 = vadd.xlane.f32.xlu0 %v877
      %v879 = vpop.xlane.xlu0 %878
      %v880 = vrcp.pop %v876
      %v881 = vrcp.pop %v879
      %v882 = vmul.f32 %v871, %v880
      %v883 = vmul.f32 %v873, %v881
      %v884 = vpack.c.bf16 %v882, %v882
      %v885 = vpack.c.bf16 %v883, %v883
      %886 = vrot.lane.b32.xlu0 %v314, 48
      %v887 = vpop.permute.xlu0 %886
      %v889 = vsel %vm318, %v884, 0
      %v892 = vsel %vm446, %v887, 0
      %894 = vmatprep.subr.bf16.mxu0 0
      %895 = vmatpush1.bf16.msra.mxu0 %v892
      %896 = vmatprep.subr.bf16.mxu0 0
      %897 = vmatpush1.bf16.msra.mxu0 0
      %898 = vmatprep.subr.bf16.mxu0 0
      %899 = vmatpush1.bf16.msra.mxu0 0
      %900 = vmatprep.subr.bf16.mxu0 0
      %901 = vmatpush1.bf16.msra.mxu0 0
      %902 = vmatprep.subr.bf16.mxu0 0
      %903 = vmatpush1.bf16.msra.mxu0 0
      %904 = vmatprep.subr.bf16.mxu0 0
      %905 = vmatpush1.bf16.msra.mxu0 0
      %906 = vmatprep.subr.bf16.mxu0 0
      %907 = vmatpush1.bf16.msra.mxu0 0
      %908 = vmatprep.subr.bf16.mxu0 0
      %909 = vmatpush1.bf16.msra.mxu0 0
      %910 = vmatprep.subr.bf16.mxu0 0
      %911 = vmatpush1.bf16.msra.mxu0 0
      %912 = vmatprep.subr.bf16.mxu0 0
      %913 = vmatpush1.bf16.msra.mxu0 0
      %914 = vmatprep.subr.bf16.mxu0 0
      %915 = vmatpush1.bf16.msra.mxu0 0
      %916 = vmatprep.subr.bf16.mxu0 0
      %917 = vmatpush1.bf16.msra.mxu0 0
      %918 = vmatprep.subr.bf16.mxu0 0
      %919 = vmatpush1.bf16.msra.mxu0 0
      %920 = vmatprep.subr.bf16.mxu0 0
      %921 = vmatpush1.bf16.msra.mxu0 0
      %922 = vmatprep.subr.bf16.mxu0 0
      %923 = vmatpush1.bf16.msra.mxu0 0
      %924 = vmatprep.subr.bf16.mxu0 0
      %925 = vmatpush1.bf16.msra.mxu0 0
      %926 = vmatprep.mubr.bf16.mxu0 0
      %927 = vmatmul.mubr.bf16.gmra.mrb[0].mxu0 %v889
      %v928 = vpop.f32.mrb[0].mxu0
      %v929 = vadd.f32 0.0, %v928
      %v930 = vpop.f32.mrb[0].mxu0
      %v931 = vpop.f32.mrb[0].mxu0
      %v932 = vpop.f32.mrb[0].mxu0
      %933 = vdwg.mxu0
      %934 = vrot.lane.b32.xlu0 %v315, 48
      %v935 = vpop.permute.xlu0 %934
      %v937 = vsel %vm318, %v885, 0
      %v940 = vsel %vm446, %v935, 0
      %942 = vmatprep.subr.bf16.mxu0 0
      %943 = vmatpush1.bf16.msra.mxu0 %v940
      %944 = vmatprep.subr.bf16.mxu0 0
      %945 = vmatpush1.bf16.msra.mxu0 0
      %946 = vmatprep.subr.bf16.mxu0 0
      %947 = vmatpush1.bf16.msra.mxu0 0
      %948 = vmatprep.subr.bf16.mxu0 0
      %949 = vmatpush1.bf16.msra.mxu0 0
      %950 = vmatprep.subr.bf16.mxu0 0
      %951 = vmatpush1.bf16.msra.mxu0 0
      %952 = vmatprep.subr.bf16.mxu0 0
      %953 = vmatpush1.bf16.msra.mxu0 0
      %954 = vmatprep.subr.bf16.mxu0 0
      %955 = vmatpush1.bf16.msra.mxu0 0
      %956 = vmatprep.subr.bf16.mxu0 0
      %957 = vmatpush1.bf16.msra.mxu0 0
      %958 = vmatprep.subr.bf16.mxu0 0
      %959 = vmatpush1.bf16.msra.mxu0 0
      %960 = vmatprep.subr.bf16.mxu0 0
      %961 = vmatpush1.bf16.msra.mxu0 0
      %962 = vmatprep.subr.bf16.mxu0 0
      %963 = vmatpush1.bf16.msra.mxu0 0
      %964 = vmatprep.subr.bf16.mxu0 0
      %965 = vmatpush1.bf16.msra.mxu0 0
      %966 = vmatprep.subr.bf16.mxu0 0
      %967 = vmatpush1.bf16.msra.mxu0 0
      %968 = vmatprep.subr.bf16.mxu0 0
      %969 = vmatpush1.bf16.msra.mxu0 0
      %970 = vmatprep.subr.bf16.mxu0 0
      %971 = vmatpush1.bf16.msra.mxu0 0
      %972 = vmatprep.subr.bf16.mxu0 0
      %973 = vmatpush1.bf16.msra.mxu0 0
      %974 = vmatprep.mubr.bf16.mxu0 0
      %975 = vmatmul.mubr.bf16.gmra.mrb[0].mxu0 %v937
      %v976 = vpop.f32.mrb[0].mxu0
      %v977 = vadd.f32 0.0, %v976
      %v978 = vpop.f32.mrb[0].mxu0
      %v979 = vpop.f32.mrb[0].mxu0
      %v980 = vpop.f32.mrb[0].mxu0
      %981 = vdwg.mxu0
      %982 = vrot.lane.b32.xlu0 %v314, 104
      %v983 = vpop.permute.xlu0 %982
      %984 = vrot.lane.b32.xlu0 %v314, 72
      %v985 = vpop.permute.xlu0 %984
      %v987 = vsel %vm318, %v983, 0
      %v990 = vsel %vm318, %v985, 0
      %992 = vmatprep.subr.bf16.mxu0 0
      %993 = vmatpush1.bf16.xpose.msra.mxu0 %v990
      %994 = vmatprep.subr.bf16.mxu0 0
      %995 = vmatpush1.bf16.xpose.msra.mxu0 0
      %996 = vmatprep.subr.bf16.mxu0 0
      %997 = vmatpush1.bf16.xpose.msra.mxu0 0
      %998 = vmatprep.subr.bf16.mxu0 0
      %999 = vmatpush1.bf16.xpose.msra.mxu0 0
      %1000 = vmatprep.subr.bf16.mxu0 0
      %1001 = vmatpush1.bf16.xpose.msra.mxu0 0
      %1002 = vmatprep.subr.bf16.mxu0 0
      %1003 = vmatpush1.bf16.xpose.msra.mxu0 0
      %1004 = vmatprep.subr.bf16.mxu0 0
      %1005 = vmatpush1.bf16.xpose.msra.mxu0 0
      %1006 = vmatprep.subr.bf16.mxu0 0
      %1007 = vmatpush1.bf16.xpose.msra.mxu0 0
      %1008 = vmatprep.subr.bf16.mxu0 0
      %1009 = vmatpush1.bf16.xpose.msra.mxu0 0
      %1010 = vmatprep.subr.bf16.mxu0 0
      %1011 = vmatpush1.bf16.xpose.msra.mxu0 0
      %1012 = vmatprep.subr.bf16.mxu0 0
      %1013 = vmatpush1.bf16.xpose.msra.mxu0 0
      %1014 = vmatprep.subr.bf16.mxu0 0
      %1015 = vmatpush1.bf16.xpose.msra.mxu0 0
      %1016 = vmatprep.subr.bf16.mxu0 0
      %1017 = vmatpush1.bf16.xpose.msra.mxu0 0
      %1018 = vmatprep.subr.bf16.mxu0 0
      %1019 = vmatpush1.bf16.xpose.msra.mxu0 0
      %1020 = vmatprep.subr.bf16.mxu0 0
      %1021 = vmatpush1.bf16.xpose.msra.mxu0 0
      %1022 = vmatprep.subr.bf16.mxu0 0
      %1023 = vmatpush1.bf16.xpose.msra.mxu0 0
      %1024 = vmatprep.mubr.bf16.mxu0 0
      %1025 = vmatmul.mubr.bf16.gmra.mrb[0].mxu0 %v987
      %v1026 = vpop.f32.mrb[0].mxu0
      %v1027 = vadd.f32 0.0, %v1026
      %v1028 = vpop.f32.mrb[0].mxu0
      %v1029 = vpop.f32.mrb[0].mxu0
      %v1030 = vpop.f32.mrb[0].mxu0
      %1031 = vdwg.mxu0
      %1032 = vrot.lane.b32.xlu0 %v315, 104
      %v1033 = vpop.permute.xlu0 %1032
      %1034 = vrot.lane.b32.xlu0 %v315, 72
      %v1035 = vpop.permute.xlu0 %1034
      %v1037 = vsel %vm318, %v1033, 0
      %v1040 = vsel %vm318, %v1035, 0
      %1042 = vmatprep.subr.bf16.mxu0 0
      %1043 = vmatpush1.bf16.xpose.msra.mxu0 %v1040
      %1044 = vmatprep.subr.bf16.mxu0 0
      %1045 = vmatpush1.bf16.xpose.msra.mxu0 0
      %1046 = vmatprep.subr.bf16.mxu0 0
      %1047 = vmatpush1.bf16.xpose.msra.mxu0 0
      %1048 = vmatprep.subr.bf16.mxu0 0
      %1049 = vmatpush1.bf16.xpose.msra.mxu0 0
      %1050 = vmatprep.subr.bf16.mxu0 0
      %1051 = vmatpush1.bf16.xpose.msra.mxu0 0
      %1052 = vmatprep.subr.bf16.mxu0 0
      %1053 = vmatpush1.bf16.xpose.msra.mxu0 0
      %1054 = vmatprep.subr.bf16.mxu0 0
      %1055 = vmatpush1.bf16.xpose.msra.mxu0 0
      %1056 = vmatprep.subr.bf16.mxu0 0
      %1057 = vmatpush1.bf16.xpose.msra.mxu0 0
      %1058 = vmatprep.subr.bf16.mxu0 0
      %1059 = vmatpush1.bf16.xpose.msra.mxu0 0
      %1060 = vmatprep.subr.bf16.mxu0 0
      %1061 = vmatpush1.bf16.xpose.msra.mxu0 0
      %1062 = vmatprep.subr.bf16.mxu0 0
      %1063 = vmatpush1.bf16.xpose.msra.mxu0 0
      %1064 = vmatprep.subr.bf16.mxu0 0
      %1065 = vmatpush1.bf16.xpose.msra.mxu0 0
      %1066 = vmatprep.subr.bf16.mxu0 0
      %1067 = vmatpush1.bf16.xpose.msra.mxu0 0
      %1068 = vmatprep.subr.bf16.mxu0 0
      %1069 = vmatpush1.bf16.xpose.msra.mxu0 0
      %1070 = vmatprep.subr.bf16.mxu0 0
      %1071 = vmatpush1.bf16.xpose.msra.mxu0 0
      %1072 = vmatprep.subr.bf16.mxu0 0
      %1073 = vmatpush1.bf16.xpose.msra.mxu0 0
      %1074 = vmatprep.mubr.bf16.mxu0 0
      %1075 = vmatmul.mubr.bf16.gmra.mrb[0].mxu0 %v1037
      %v1076 = vpop.f32.mrb[0].mxu0
      %v1077 = vadd.f32 0.0, %v1076
      %v1078 = vpop.f32.mrb[0].mxu0
      %v1079 = vpop.f32.mrb[0].mxu0
      %v1080 = vpop.f32.mrb[0].mxu0
      %1081 = vdwg.mxu0
      %v1082 = vsel %vm414, %v1027, -1e+30
      %v1083 = vsel %vm414, %v1077, -1e+30
      %v1084 = vsel %vm318, %v1082, -inf
      %1085 = vmax.xlane.f32.xlu0 %v1084
      %v1086 = vpop.xlane.xlu0 %1085
      %v1087 = vsel %vm318, %v1083, -inf
      %1088 = vmax.xlane.f32.xlu0 %v1087
      %v1089 = vpop.xlane.xlu0 %1088
      %v1090 = vsub.f32 %v1082, %v1086
      %v1091 = vsub.f32 %v1083, %v1089
      %v1092 = vmul.f32 %v1090, 1.442695
      %v1093 = vpow.pop %v1092
      %v1094 = vmul.f32 %v1091, 1.442695
      %v1095 = vpow.pop %v1094
      %v1096 = vsel %vm318, %v1093, 0.0
      %1097 = vadd.xlane.f32.xlu0 %v1096
      %v1098 = vpop.xlane.xlu0 %1097
      %v1099 = vsel %vm318, %v1095, 0.0
      %1100 = vadd.xlane.f32.xlu0 %v1099
      %v1101 = vpop.xlane.xlu0 %1100
      %v1102 = vrcp.pop %v1098
      %v1103 = vrcp.pop %v1101
      %v1104 = vmul.f32 %v1093, %v1102
      %v1105 = vmul.f32 %v1095, %v1103
      %v1106 = vpack.c.bf16 %v1104, %v1104
      %v1107 = vpack.c.bf16 %v1105, %v1105
      %1108 = vrot.lane.b32.xlu0 %v314, 40
      %v1109 = vpop.permute.xlu0 %1108
      %v1111 = vsel %vm318, %v1106, 0
      %v1114 = vsel %vm446, %v1109, 0
      %1116 = vmatprep.subr.bf16.mxu0 0
      %1117 = vmatpush1.bf16.msra.mxu0 %v1114
      %1118 = vmatprep.subr.bf16.mxu0 0
      %1119 = vmatpush1.bf16.msra.mxu0 0
      %1120 = vmatprep.subr.bf16.mxu0 0
      %1121 = vmatpush1.bf16.msra.mxu0 0
      %1122 = vmatprep.subr.bf16.mxu0 0
      %1123 = vmatpush1.bf16.msra.mxu0 0
      %1124 = vmatprep.subr.bf16.mxu0 0
      %1125 = vmatpush1.bf16.msra.mxu0 0
      %1126 = vmatprep.subr.bf16.mxu0 0
      %1127 = vmatpush1.bf16.msra.mxu0 0
      %1128 = vmatprep.subr.bf16.mxu0 0
      %1129 = vmatpush1.bf16.msra.mxu0 0
      %1130 = vmatprep.subr.bf16.mxu0 0
      %1131 = vmatpush1.bf16.msra.mxu0 0
      %1132 = vmatprep.subr.bf16.mxu0 0
      %1133 = vmatpush1.bf16.msra.mxu0 0
      %1134 = vmatprep.subr.bf16.mxu0 0
      %1135 = vmatpush1.bf16.msra.mxu0 0
      %1136 = vmatprep.subr.bf16.mxu0 0
      %1137 = vmatpush1.bf16.msra.mxu0 0
      %1138 = vmatprep.subr.bf16.mxu0 0
      %1139 = vmatpush1.bf16.msra.mxu0 0
      %1140 = vmatprep.subr.bf16.mxu0 0
      %1141 = vmatpush1.bf16.msra.mxu0 0
      %1142 = vmatprep.subr.bf16.mxu0 0
      %1143 = vmatpush1.bf16.msra.mxu0 0
      %1144 = vmatprep.subr.bf16.mxu0 0
      %1145 = vmatpush1.bf16.msra.mxu0 0
      %1146 = vmatprep.subr.bf16.mxu0 0
      %1147 = vmatpush1.bf16.msra.mxu0 0
      %1148 = vmatprep.mubr.bf16.mxu0 0
      %1149 = vmatmul.mubr.bf16.gmra.mrb[0].mxu0 %v1111
      %v1150 = vpop.f32.mrb[0].mxu0
      %v1151 = vadd.f32 0.0, %v1150
      %v1152 = vpop.f32.mrb[0].mxu0
      %v1153 = vpop.f32.mrb[0].mxu0
      %v1154 = vpop.f32.mrb[0].mxu0
      %1155 = vdwg.mxu0
      %1156 = vrot.lane.b32.xlu0 %v315, 40
      %v1157 = vpop.permute.xlu0 %1156
      %v1159 = vsel %vm318, %v1107, 0
      %v1162 = vsel %vm446, %v1157, 0
      %1164 = vmatprep.subr.bf16.mxu0 0
      %1165 = vmatpush1.bf16.msra.mxu0 %v1162
      %1166 = vmatprep.subr.bf16.mxu0 0
      %1167 = vmatpush1.bf16.msra.mxu0 0
      %1168 = vmatprep.subr.bf16.mxu0 0
      %1169 = vmatpush1.bf16.msra.mxu0 0
      %1170 = vmatprep.subr.bf16.mxu0 0
      %1171 = vmatpush1.bf16.msra.mxu0 0
      %1172 = vmatprep.subr.bf16.mxu0 0
      %1173 = vmatpush1.bf16.msra.mxu0 0
      %1174 = vmatprep.subr.bf16.mxu0 0
      %1175 = vmatpush1.bf16.msra.mxu0 0
      %1176 = vmatprep.subr.bf16.mxu0 0
      %1177 = vmatpush1.bf16.msra.mxu0 0
      %1178 = vmatprep.subr.bf16.mxu0 0
      %1179 = vmatpush1.bf16.msra.mxu0 0
      %1180 = vmatprep.subr.bf16.mxu0 0
      %1181 = vmatpush1.bf16.msra.mxu0 0
      %1182 = vmatprep.subr.bf16.mxu0 0
      %1183 = vmatpush1.bf16.msra.mxu0 0
      %1184 = vmatprep.subr.bf16.mxu0 0
      %1185 = vmatpush1.bf16.msra.mxu0 0
      %1186 = vmatprep.subr.bf16.mxu0 0
      %1187 = vmatpush1.bf16.msra.mxu0 0
      %1188 = vmatprep.subr.bf16.mxu0 0
      %1189 = vmatpush1.bf16.msra.mxu0 0
      %1190 = vmatprep.subr.bf16.mxu0 0
      %1191 = vmatpush1.bf16.msra.mxu0 0
      %1192 = vmatprep.subr.bf16.mxu0 0
      %1193 = vmatpush1.bf16.msra.mxu0 0
      %1194 = vmatprep.subr.bf16.mxu0 0
      %1195 = vmatpush1.bf16.msra.mxu0 0
      %1196 = vmatprep.mubr.bf16.mxu0 0
      %1197 = vmatmul.mubr.bf16.gmra.mrb[0].mxu0 %v1159
      %v1198 = vpop.f32.mrb[0].mxu0
      %v1199 = vadd.f32 0.0, %v1198
      %v1200 = vpop.f32.mrb[0].mxu0
      %v1201 = vpop.f32.mrb[0].mxu0
      %v1202 = vpop.f32.mrb[0].mxu0
      %1203 = vdwg.mxu0
      %1206 = vrot.lane.b32.xlu0 %v707, 8
      %v1207 = vpop.permute.xlu0 %1206
      %1208 = vrot.lane.b32.xlu0 %v755, 8
      %v1209 = vpop.permute.xlu0 %1208
      %1214 = vrot.lane.b32.xlu0 %v929, 16
      %v1215 = vpop.permute.xlu0 %1214
      %1216 = vrot.lane.b32.xlu0 %v977, 16
      %v1217 = vpop.permute.xlu0 %1216
      %1222 = vrot.lane.b32.xlu0 %v1151, 24
      %v1223 = vpop.permute.xlu0 %1222
      %1224 = vrot.lane.b32.xlu0 %v1199, 24
      %v1225 = vpop.permute.xlu0 %1224
      %v1228 = vsel %vm318, %v485, %v1207
      %v1229 = vsel %vm318, %v533, %v1209
      %vm1230 = vcmask 130048
      %v1231 = vsel %vm1230, %v1228, %v1215
      %v1232 = vsel %vm1230, %v1229, %v1217
      %vm1233 = vcmask 195584
      %v1234 = vsel %vm1233, %v1231, %v1223
      %v1235 = vsel %vm1233, %v1232, %v1225
      %v1236 = vpack.c.bf16 %v1235, %v1234
      %s1237 = smul.addr %s238, 4
      %s1238 = scalar_lea.vmem %s7, %s1237
      %v1239 = vld [vmem:[%s1238] sm:$0xf]
      %v1240 = vld [vmem:[%s1238 + $0x4] sm:$0xf]
      %v1241 = vld [vmem:[%s1238 + $0x8] sm:$0xf]
      %v1242 = vld [vmem:[%s1238 + $0xc] sm:$0xf]
      %s1243 = scalar_lea.vmem %s8, %s230
      %v1244 = vld [vmem:[%s1243] sm:$0x1]
      %v1246 = vlaneseq
      %v1247 = vshrl.u32 %v1246, 7
      %v1248 = vsub.s32 0, %v1247
      %v1249 = vrot.slane %v1244, %v1248
      %v1255 = vunpack.c.l.b16 %v1239
      %v1256 = vunpack.c.l.b16 %v1240
      %v1257 = vunpack.c.l.b16 %v1241
      %v1258 = vunpack.c.l.b16 %v1242
      %v1259 = vpack.c.b16 %v1256, %v1255
      %v1260 = vpack.c.b16 %v1258, %v1257
      %v1264 = vsel %vm265, %v1236, 0
      %1266 = vmatprep.subr.bf16.mxu0 0
      %1267 = vmatpush1.bf16.msra.mxu0 %v1259
      %1268 = vmatprep.subr.bf16.mxu0 0
      %1269 = vmatpush1.bf16.msra.mxu0 %v1260
      %1270 = vmatprep.subr.bf16.mxu0 0
      %1271 = vmatpush1.bf16.msra.mxu0 0
      %1272 = vmatprep.subr.bf16.mxu0 0
      %1273 = vmatpush1.bf16.msra.mxu0 0
      %1274 = vmatprep.subr.bf16.mxu0 0
      %1275 = vmatpush1.bf16.msra.mxu0 0
      %1276 = vmatprep.subr.bf16.mxu0 0
      %1277 = vmatpush1.bf16.msra.mxu0 0
      %1278 = vmatprep.subr.bf16.mxu0 0
      %1279 = vmatpush1.bf16.msra.mxu0 0
      %1280 = vmatprep.subr.bf16.mxu0 0
      %1281 = vmatpush1.bf16.msra.mxu0 0
      %1282 = vmatprep.subr.bf16.mxu0 0
      %1283 = vmatpush1.bf16.msra.mxu0 0
      %1284 = vmatprep.subr.bf16.mxu0 0
      %1285 = vmatpush1.bf16.msra.mxu0 0
      %1286 = vmatprep.subr.bf16.mxu0 0
      %1287 = vmatpush1.bf16.msra.mxu0 0
      %1288 = vmatprep.subr.bf16.mxu0 0
      %1289 = vmatpush1.bf16.msra.mxu0 0
      %1290 = vmatprep.subr.bf16.mxu0 0
      %1291 = vmatpush1.bf16.msra.mxu0 0
      %1292 = vmatprep.subr.bf16.mxu0 0
      %1293 = vmatpush1.bf16.msra.mxu0 0
      %1294 = vmatprep.subr.bf16.mxu0 0
      %1295 = vmatpush1.bf16.msra.mxu0 0
      %1296 = vmatprep.subr.bf16.mxu0 0
      %1297 = vmatpush1.bf16.msra.mxu0 0
      %1298 = vmatprep.mubr.bf16.mxu0 0
      %1299 = vmatmul.mubr.bf16.gmra.mrb[0].mxu0 %v1264
      %v1300 = vpop.f32.mrb[0].mxu0
      %v1301 = vadd.f32 %v1249, %v1300
      %v1302 = vpop.f32.mrb[0].mxu0
      %v1303 = vpop.f32.mrb[0].mxu0
      %v1304 = vadd.f32 %v1249, %v1303
      %v1305 = vpop.f32.mrb[0].mxu0
      %1306 = vdwg.mxu0
      %v1307 = vadd.f32 %v235, %v1301
      %v1308 = vadd.f32 %v236, %v1304
      %s1309 = scalar_lea.vmem %s9, %s230
      %v1310 = vld [vmem:[%s1309] sm:$0x1]
      %s1311 = scalar_lea.vmem %s10, %s230
      %v1312 = vld [vmem:[%s1311] sm:$0x1]
      %v1313 = vsel %vm265, %v1307, 0.0
      %1314 = vadd.xlane.f32.xlu0 %v1313
      %v1315 = vpop.xlane.xlu0 %1314
      %v1316 = vsel %vm265, %v1308, 0.0
      %1317 = vadd.xlane.f32.xlu0 %v1316
      %v1318 = vpop.xlane.xlu0 %1317
      %v1319 = vrcp.pop 32.0
      %v1320 = vmul.f32 %v1315, %v1319
      %v1321 = vmul.f32 %v1318, %v1319
      %v1322 = vsub.f32 %v1307, %v1320
      %v1323 = vsub.f32 %v1308, %v1321
      %v1324 = vmul.f32 %v1322, %v1322
      %v1325 = vmul.f32 %v1323, %v1323
      %v1326 = vsel %vm265, %v1324, 0.0
      %1327 = vadd.xlane.f32.xlu0 %v1326
      %v1328 = vpop.xlane.xlu0 %1327
      %v1329 = vsel %vm265, %v1325, 0.0
      %1330 = vadd.xlane.f32.xlu0 %v1329
      %v1331 = vpop.xlane.xlu0 %1330
      %v1332 = vmul.f32 %v1328, %v1319
      %v1333 = vmul.f32 %v1331, %v1319
      %v1334 = vadd.f32 %v1332, 1e-05
      %v1335 = vadd.f32 %v1333, 1e-05
      %v1336 = vrsqrt.pop %v1334
      %v1337 = vrsqrt.pop %v1335
      %v1338 = vmul.f32 %v1322, %v1336
      %v1339 = vmul.f32 %v1323, %v1337
      %v1341 = vlaneseq
      %v1342 = vshrl.u32 %v1341, 7
      %v1343 = vsub.s32 0, %v1342
      %v1344 = vrot.slane %v1310, %v1343
      %v1346 = vmul.f32 %v1338, %v1344
      %v1347 = vmul.f32 %v1339, %v1344
      %v1349 = vlaneseq
      %v1350 = vshrl.u32 %v1349, 7
      %v1351 = vsub.s32 0, %v1350
      %v1352 = vrot.slane %v1312, %v1351
      %v1354 = vadd.f32 %v1346, %v1352
      %v1355 = vadd.f32 %v1347, %v1352
      %s1356 = scalar_lea.vmem %s11, %s230
      %v1357 = vld [vmem:[%s1356] sm:$0x1]
      %v1359 = vlaneseq
      %v1360 = vshrl.u32 %v1359, 7
      %v1361 = vsub.s32 0, %v1360
      %v1362 = vrot.slane %v1357, %v1361
      %v1364 = vadd.f32 %v1354, %v1362
      %v1365 = vadd.f32 %v1355, %v1362
      %s1366 = scalar_lea.vmem %s12, %s230
      %v1367 = vld [vmem:[%s1366] sm:$0x1]
      %s1368 = scalar_lea.vmem %s13, %s230
      %v1369 = vld [vmem:[%s1368] sm:$0x1]
      %v1370 = vsel %vm265, %v1364, 0.0
      %1371 = vadd.xlane.f32.xlu0 %v1370
      %v1372 = vpop.xlane.xlu0 %1371
      %v1373 = vsel %vm265, %v1365, 0.0
      %1374 = vadd.xlane.f32.xlu0 %v1373
      %v1375 = vpop.xlane.xlu0 %1374
      %v1376 = vmul.f32 %v1372, %v1319
      %v1377 = vmul.f32 %v1375, %v1319
      %v1378 = vsub.f32 %v1364, %v1376
      %v1379 = vsub.f32 %v1365, %v1377
      %v1380 = vmul.f32 %v1378, %v1378
      %v1381 = vmul.f32 %v1379, %v1379
      %v1382 = vsel %vm265, %v1380, 0.0
      %1383 = vadd.xlane.f32.xlu0 %v1382
      %v1384 = vpop.xlane.xlu0 %1383
      %v1385 = vsel %vm265, %v1381, 0.0
      %1386 = vadd.xlane.f32.xlu0 %v1385
      %v1387 = vpop.xlane.xlu0 %1386
      %v1388 = vmul.f32 %v1384, %v1319
      %v1389 = vmul.f32 %v1387, %v1319
      %v1390 = vadd.f32 %v1388, 1e-05
      %v1391 = vadd.f32 %v1389, 1e-05
      %v1392 = vrsqrt.pop %v1390
      %v1393 = vrsqrt.pop %v1391
      %v1394 = vmul.f32 %v1378, %v1392
      %v1395 = vmul.f32 %v1379, %v1393
      %v1397 = vlaneseq
      %v1398 = vshrl.u32 %v1397, 7
      %v1399 = vsub.s32 0, %v1398
      %v1400 = vrot.slane %v1367, %v1399
      %v1402 = vmul.f32 %v1394, %v1400
      %v1403 = vmul.f32 %v1395, %v1400
      %v1405 = vlaneseq
      %v1406 = vshrl.u32 %v1405, 7
      %v1407 = vsub.s32 0, %v1406
      %v1408 = vrot.slane %v1369, %v1407
      %v1410 = vadd.f32 %v1402, %v1408
      %v1411 = vadd.f32 %v1403, %v1408
      %v1412 = vpack.c.bf16 %v1411, %v1410
      %s1413 = smul.addr %s238, 4
      %s1414 = scalar_lea.vmem %s14, %s1413
      %v1415 = vld [vmem:[%s1414] sm:$0xf]
      %v1416 = vld [vmem:[%s1414 + $0x4] sm:$0xf]
      %v1417 = vld [vmem:[%s1414 + $0x8] sm:$0xf]
      %v1418 = vld [vmem:[%s1414 + $0xc] sm:$0xf]
      %s1419 = scalar_lea.vmem %s15, %s230
      %v1420 = vld [vmem:[%s1419] sm:$0x1]
      %v1422 = vlaneseq
      %v1423 = vshrl.u32 %v1422, 7
      %v1424 = vsub.s32 0, %v1423
      %v1425 = vrot.slane %v1420, %v1424
      %v1431 = vunpack.c.l.b16 %v1415
      %v1432 = vunpack.c.l.b16 %v1416
      %v1433 = vunpack.c.l.b16 %v1417
      %v1434 = vunpack.c.l.b16 %v1418
      %v1435 = vpack.c.b16 %v1432, %v1431
      %v1436 = vpack.c.b16 %v1434, %v1433
      %v1440 = vsel %vm265, %v1412, 0
      %1442 = vmatprep.subr.bf16.mxu0 0
      %1443 = vmatpush1.bf16.msra.mxu0 %v1435
      %1444 = vmatprep.subr.bf16.mxu0 0
      %1445 = vmatpush1.bf16.msra.mxu0 %v1436
      %1446 = vmatprep.subr.bf16.mxu0 0
      %1447 = vmatpush1.bf16.msra.mxu0 0
      %1448 = vmatprep.subr.bf16.mxu0 0
      %1449 = vmatpush1.bf16.msra.mxu0 0
      %1450 = vmatprep.subr.bf16.mxu0 0
      %1451 = vmatpush1.bf16.msra.mxu0 0
      %1452 = vmatprep.subr.bf16.mxu0 0
      %1453 = vmatpush1.bf16.msra.mxu0 0
      %1454 = vmatprep.subr.bf16.mxu0 0
      %1455 = vmatpush1.bf16.msra.mxu0 0
      %1456 = vmatprep.subr.bf16.mxu0 0
      %1457 = vmatpush1.bf16.msra.mxu0 0
      %1458 = vmatprep.subr.bf16.mxu0 0
      %1459 = vmatpush1.bf16.msra.mxu0 0
      %1460 = vmatprep.subr.bf16.mxu0 0
      %1461 = vmatpush1.bf16.msra.mxu0 0
      %1462 = vmatprep.subr.bf16.mxu0 0
      %1463 = vmatpush1.bf16.msra.mxu0 0
      %1464 = vmatprep.subr.bf16.mxu0 0
      %1465 = vmatpush1.bf16.msra.mxu0 0
      %1466 = vmatprep.subr.bf16.mxu0 0
      %1467 = vmatpush1.bf16.msra.mxu0 0
      %1468 = vmatprep.subr.bf16.mxu0 0
      %1469 = vmatpush1.bf16.msra.mxu0 0
      %1470 = vmatprep.subr.bf16.mxu0 0
      %1471 = vmatpush1.bf16.msra.mxu0 0
      %1472 = vmatprep.subr.bf16.mxu0 0
      %1473 = vmatpush1.bf16.msra.mxu0 0
      %1474 = vmatprep.mubr.bf16.mxu0 0
      %1475 = vmatmul.mubr.bf16.gmra.mrb[0].mxu0 %v1440
      %v1476 = vpop.f32.mrb[0].mxu0
      %v1477 = vadd.f32 %v1425, %v1476
      %v1478 = vpop.f32.mrb[0].mxu0
      %v1479 = vpop.f32.mrb[0].mxu0
      %v1480 = vadd.f32 %v1425, %v1479
      %v1481 = vpop.f32.mrb[0].mxu0
      %1482 = vdwg.mxu0
      %v1483 = vand.u32 2147483647, %v1477
      %v1484 = vand.u32 2147483647, %v1480
      %v1485 = vmul.f32 %v1483, 0.3275911
      %v1486 = vmul.f32 %v1484, 0.3275911
      %v1487 = vadd.f32 %v1485, 1.0
      %v1488 = vadd.f32 %v1486, 1.0
      %v1489 = vrcp.pop %v1487
      %v1490 = vmul.f32 1.0, %v1489
      %v1491 = vrcp.pop %v1488
      %v1492 = vmul.f32 1.0, %v1491
      %v1493 = vmul.f32 %v1490, 1.0614054
      %v1494 = vmul.f32 %v1492, 1.0614054
      %v1495 = vadd.f32 %v1493, -1.4531521
      %v1496 = vadd.f32 %v1494, -1.4531521
      %v1497 = vmul.f32 %v1495, %v1490
      %v1498 = vmul.f32 %v1496, %v1492
      %v1499 = vadd.f32 %v1497, 1.4214138
      %v1500 = vadd.f32 %v1498, 1.4214138
      %v1501 = vmul.f32 %v1499, %v1490
      %v1502 = vmul.f32 %v1500, %v1492
      %v1503 = vadd.f32 %v1501, -0.28449672
      %v1504 = vadd.f32 %v1502, -0.28449672
      %v1505 = vmul.f32 %v1503, %v1490
      %v1506 = vmul.f32 %v1504, %v1492
      %v1507 = vadd.f32 %v1505, 0.2548296
      %v1508 = vadd.f32 %v1506, 0.2548296
      %v1509 = vmul.f32 %v1507, %v1490
      %v1510 = vmul.f32 %v1508, %v1492
      %v1511 = vsub.f32 0.0, %v1483
      %v1512 = vsub.f32 0.0, %v1484
      %v1513 = vmul.f32 %v1511, %v1483
      %v1514 = vmul.f32 %v1512, %v1484
      %v1515 = vmul.f32 %v1513, 1.442695
      %v1516 = vpow.pop %v1515
      %v1517 = vmul.f32 %v1514, 1.442695
      %v1518 = vpow.pop %v1517
      %v1519 = vmul.f32 %v1509, %v1516
      %v1520 = vmul.f32 %v1510, %v1518
      %v1521 = vsub.f32 1.0, %v1519
      %v1522 = vsub.f32 1.0, %v1520
      %vm1523 = vcmp.ge.f32.partialorder %v1477, 0.0
      %vm1524 = vcmp.ge.f32.partialorder %v1480, 0.0
      %v1525 = vsub.f32 0.0, %v1521
      %v1526 = vsub.f32 0.0, %v1522
      %v1527 = vsel %vm1523, %v1521, %v1525
      %v1528 = vsel %vm1524, %v1522, %v1526
      %v1529 = vadd.f32 %v1527, 1.0
      %v1530 = vadd.f32 %v1528, 1.0
      %v1531 = vmul.f32 %v1477, %v1529
      %v1532 = vmul.f32 %v1480, %v1530
      %v1533 = vpack.c.bf16 %v1532, %v1531
      %s1534 = smul.u32 %s230, 8
      %s1535 = smul.addr %s1534, 4
      %s1536 = scalar_lea.vmem %s16, %s1535
      %v1537 = vld [vmem:[%s1536] sm:$0xf]
      %v1538 = vld [vmem:[%s1536 + $0x4] sm:$0xf]
      %v1539 = vld [vmem:[%s1536 + $0x8] sm:$0xf]
      %v1540 = vld [vmem:[%s1536 + $0xc] sm:$0xf]
      %v1541 = vld [vmem:[%s1536 + $0x10] sm:$0xf]
      %v1542 = vld [vmem:[%s1536 + $0x14] sm:$0xf]
      %v1543 = vld [vmem:[%s1536 + $0x18] sm:$0xf]
      %v1544 = vld [vmem:[%s1536 + $0x1c] sm:$0xf]
      %s1545 = scalar_lea.vmem %s17, %s230
      %v1546 = vld [vmem:[%s1545] sm:$0x1]
      %v1548 = vlaneseq
      %v1549 = vshrl.u32 %v1548, 7
      %v1550 = vsub.s32 0, %v1549
      %v1551 = vrot.slane %v1546, %v1550
      %v1561 = vunpack.c.l.b16 %v1537
      %v1562 = vunpack.c.l.b16 %v1538
      %v1563 = vunpack.c.l.b16 %v1539
      %v1564 = vunpack.c.l.b16 %v1540
      %v1565 = vunpack.c.l.b16 %v1541
      %v1566 = vunpack.c.l.b16 %v1542
      %v1567 = vunpack.c.l.b16 %v1543
      %v1568 = vunpack.c.l.b16 %v1544
      %v1569 = vpack.c.b16 %v1562, %v1561
      %v1570 = vpack.c.b16 %v1564, %v1563
      %v1571 = vpack.c.b16 %v1566, %v1565
      %v1572 = vpack.c.b16 %v1568, %v1567
      %vm1577 = vcmask 523264
      %v1579 = vsel %vm1577, %v1533, 0
      %1581 = vmatprep.subr.bf16.mxu0 0
      %1582 = vmatpush1.bf16.msra.mxu0 %v1569
      %1583 = vmatprep.subr.bf16.mxu0 0
      %1584 = vmatpush1.bf16.msra.mxu0 %v1570
      %1585 = vmatprep.subr.bf16.mxu0 0
      %1586 = vmatpush1.bf16.msra.mxu0 %v1571
      %1587 = vmatprep.subr.bf16.mxu0 0
      %1588 = vmatpush1.bf16.msra.mxu0 %v1572
      %1589 = vmatprep.subr.bf16.mxu0 0
      %1590 = vmatpush1.bf16.msra.mxu0 0
      %1591 = vmatprep.subr.bf16.mxu0 0
      %1592 = vmatpush1.bf16.msra.mxu0 0
      %1593 = vmatprep.subr.bf16.mxu0 0
      %1594 = vmatpush1.bf16.msra.mxu0 0
      %1595 = vmatprep.subr.bf16.mxu0 0
      %1596 = vmatpush1.bf16.msra.mxu0 0
      %1597 = vmatprep.subr.bf16.mxu0 0
      %1598 = vmatpush1.bf16.msra.mxu0 0
      %1599 = vmatprep.subr.bf16.mxu0 0
      %1600 = vmatpush1.bf16.msra.mxu0 0
      %1601 = vmatprep.subr.bf16.mxu0 0
      %1602 = vmatpush1.bf16.msra.mxu0 0
      %1603 = vmatprep.subr.bf16.mxu0 0
      %1604 = vmatpush1.bf16.msra.mxu0 0
      %1605 = vmatprep.subr.bf16.mxu0 0
      %1606 = vmatpush1.bf16.msra.mxu0 0
      %1607 = vmatprep.subr.bf16.mxu0 0
      %1608 = vmatpush1.bf16.msra.mxu0 0
      %1609 = vmatprep.subr.bf16.mxu0 0
      %1610 = vmatpush1.bf16.msra.mxu0 0
      %1611 = vmatprep.subr.bf16.mxu0 0
      %1612 = vmatpush1.bf16.msra.mxu0 0
      %1613 = vmatprep.mubr.bf16.mxu0 0
      %1614 = vmatmul.mubr.bf16.gmra.mrb[0].mxu0 %v1579
      %v1615 = vpop.f32.mrb[0].mxu0
      %v1616 = vadd.f32 %v1551, %v1615
      %v1617 = vpop.f32.mrb[0].mxu0
      %v1618 = vpop.f32.mrb[0].mxu0
      %v1619 = vadd.f32 %v1551, %v1618
      %v1620 = vpop.f32.mrb[0].mxu0
      %1621 = vdwg.mxu0
      %v1622 = vadd.f32 %v1410, %v1616
      %v1623 = vadd.f32 %v1411, %v1619
      %s1624 = scalar_lea.vmem %s18, %s230
      %v1625 = vld [vmem:[%s1624] sm:$0x1]
      %s1626 = scalar_lea.vmem %s19, %s230
      %v1627 = vld [vmem:[%s1626] sm:$0x1]
      %v1628 = vsel %vm265, %v1622, 0.0
      %1629 = vadd.xlane.f32.xlu0 %v1628
      %v1630 = vpop.xlane.xlu0 %1629
      %v1631 = vsel %vm265, %v1623, 0.0
      %1632 = vadd.xlane.f32.xlu0 %v1631
      %v1633 = vpop.xlane.xlu0 %1632
      %v1634 = vmul.f32 %v1630, %v1319
      %v1635 = vmul.f32 %v1633, %v1319
      %v1636 = vsub.f32 %v1622, %v1634
      %v1637 = vsub.f32 %v1623, %v1635
      %v1638 = vmul.f32 %v1636, %v1636
      %v1639 = vmul.f32 %v1637, %v1637
      %v1640 = vsel %vm265, %v1638, 0.0
      %1641 = vadd.xlane.f32.xlu0 %v1640
      %v1642 = vpop.xlane.xlu0 %1641
      %v1643 = vsel %vm265, %v1639, 0.0
      %1644 = vadd.xlane.f32.xlu0 %v1643
      %v1645 = vpop.xlane.xlu0 %1644
      %v1646 = vmul.f32 %v1642, %v1319
      %v1647 = vmul.f32 %v1645, %v1319
      %v1648 = vadd.f32 %v1646, 1e-05
      %v1649 = vadd.f32 %v1647, 1e-05
      %v1650 = vrsqrt.pop %v1648
      %v1651 = vrsqrt.pop %v1649
      %v1652 = vmul.f32 %v1636, %v1650
      %v1653 = vmul.f32 %v1637, %v1651
      %v1655 = vlaneseq
      %v1656 = vshrl.u32 %v1655, 7
      %v1657 = vsub.s32 0, %v1656
      %v1658 = vrot.slane %v1625, %v1657
      %v1660 = vmul.f32 %v1652, %v1658
      %v1661 = vmul.f32 %v1653, %v1658
      %v1663 = vlaneseq
      %v1664 = vshrl.u32 %v1663, 7
      %v1665 = vsub.s32 0, %v1664
      %v1666 = vrot.slane %v1627, %v1665
      %v1668 = vadd.f32 %v1660, %v1666
      %v1669 = vadd.f32 %v1661, %v1666
    $region94: #{tpu_custom_call.1} parent=1 // loop_footer
      %s234 = sadd.s32 1, %s230
    $region95: #{tpu_custom_call.1} parent=1 // loop_footer_branch
      %229 = sbr.rel target = $region91
    $region96: #{tpu_custom_call.1} parent=1 // loop_exit
      _
    %v1670 = vpack.c.bf16 %v236, %v235
    %v1671 = vld [vmem:[%s20] sm:$0xf]
    %v1672 = vld [vmem:[%s20 + $0x4] sm:$0xf]
    %v1673 = vld [vmem:[%s20 + $0x8] sm:$0xf]
    %v1674 = vld [vmem:[%s20 + $0xc] sm:$0xf]
    %v1675 = vld [vmem:[%s21] sm:$0x1]
    %v1677 = vlaneseq
    %v1678 = vshrl.u32 %v1677, 7
    %v1679 = vsub.s32 0, %v1678
    %v1680 = vrot.slane %v1675, %v1679
    %v1686 = vunpack.c.l.b16 %v1671
    %v1687 = vunpack.c.l.b16 %v1672
    %v1688 = vunpack.c.l.b16 %v1673
    %v1689 = vunpack.c.l.b16 %v1674
    %v1690 = vpack.c.b16 %v1687, %v1686
    %v1691 = vpack.c.b16 %v1689, %v1688
    %vm1694 = vcmask 261120
    %v1696 = vsel %vm1694, %v1670, 0
    %1698 = vmatprep.subr.bf16.mxu0 0
    %1699 = vmatpush1.bf16.msra.mxu0 %v1690
    %1700 = vmatprep.subr.bf16.mxu0 0
    %1701 = vmatpush1.bf16.msra.mxu0 %v1691
    %1702 = vmatprep.subr.bf16.mxu0 0
    %1703 = vmatpush1.bf16.msra.mxu0 0
    %1704 = vmatprep.subr.bf16.mxu0 0
    %1705 = vmatpush1.bf16.msra.mxu0 0
    %1706 = vmatprep.subr.bf16.mxu0 0
    %1707 = vmatpush1.bf16.msra.mxu0 0
    %1708 = vmatprep.subr.bf16.mxu0 0
    %1709 = vmatpush1.bf16.msra.mxu0 0
    %1710 = vmatprep.subr.bf16.mxu0 0
    %1711 = vmatpush1.bf16.msra.mxu0 0
    %1712 = vmatprep.subr.bf16.mxu0 0
    %1713 = vmatpush1.bf16.msra.mxu0 0
    %1714 = vmatprep.subr.bf16.mxu0 0
    %1715 = vmatpush1.bf16.msra.mxu0 0
    %1716 = vmatprep.subr.bf16.mxu0 0
    %1717 = vmatpush1.bf16.msra.mxu0 0
    %1718 = vmatprep.subr.bf16.mxu0 0
    %1719 = vmatpush1.bf16.msra.mxu0 0
    %1720 = vmatprep.subr.bf16.mxu0 0
    %1721 = vmatpush1.bf16.msra.mxu0 0
    %1722 = vmatprep.subr.bf16.mxu0 0
    %1723 = vmatpush1.bf16.msra.mxu0 0
    %1724 = vmatprep.subr.bf16.mxu0 0
    %1725 = vmatpush1.bf16.msra.mxu0 0
    %1726 = vmatprep.subr.bf16.mxu0 0
    %1727 = vmatpush1.bf16.msra.mxu0 0
    %1728 = vmatprep.subr.bf16.mxu0 0
    %1729 = vmatpush1.bf16.msra.mxu0 0
    %1730 = vmatprep.mubr.bf16.mxu0 0
    %1731 = vmatmul.mubr.bf16.gmra.mrb[0].mxu0 %v1696
    %v1732 = vpop.f32.mrb[0].mxu0
    %v1733 = vadd.f32 %v1680, %v1732
    %v1734 = vpop.f32.mrb[0].mxu0
    %v1735 = vpop.f32.mrb[0].mxu0
    %v1736 = vadd.f32 %v1680, %v1735
    %v1737 = vpop.f32.mrb[0].mxu0
    %1738 = vdwg.mxu0
    %1739 = vst [vmem:[#allocation2] sm:$0xff] %v1733
    %1740 = vst [vmem:[#allocation2 + $0x8] sm:$0xff] %v1736
    // Predicated region
    $region97: #{tpu_custom_call.1} parent=1 // pred_check
      _
    $region98: #{tpu_custom_call.1} parent=1 // pred_check_branch
      %1742 = sbr.rel (0) target = $region100
    $region99: #{tpu_custom_call.1} parent=1 // pred_region
      %s1744 = ssub.s32 256, 256
      %1745 = vsyncadd [#allocation3], %s1744
      %s1746 = sshll.u32 [#allocation2], 4
      %s1747 = int_to_ptr.vmem [resolvable:$true] %s1746
      %1752 = dma.vmem_to_hbm [thread:$0]  %s1747, 256, %s22, [#allocation3], 128, 128, 8
    $region100: #{tpu_custom_call.1} parent=1 // pred_fallthru
      _
    // Predicated region
    $region101: #{tpu_custom_call.1} parent=1 // pred_check
      _
    $region102: #{tpu_custom_call.1} parent=1 // pred_check_branch
      %1754 = sbr.rel (0) target = $region104
    $region103: #{tpu_custom_call.1} parent=1 // pred_region
      %1755 = dma.done [#allocation3], 256
    $region104: #{tpu_custom_call.1} parent=1 // pred_fallthru
      _
    %1756 = vsyncpa [#allocation3], 1

</llo_original>
